<compile_context>
chip_gen: v5e
topology: v5e:2x2
jax: 0.10.0
libtpu: 0.0.40
codegen_flags: <defaults>
</compile_context>

<pallas_src>
import functools

import jax
import jax.numpy as jnp
from jax.experimental import pallas as pl
from jax.experimental.pallas import tpu as pltpu


# Column order of the packed (hidden, 12) per-channel parameter matrix.
_PC_COLS = ("b_in",
            "a1", "g1", "be1", "bd1",
            "a2", "g2", "be2", "bd2",
            "a3", "g3", "be3")


def _stcm_kernel(x_ref, w_in_ref, wd_ref, w_out_ref, pc_ref, b_out_ref, o_ref,
                 *, dilation, eps):
    f32 = jnp.float32
    x = x_ref[0]                                   # (C, T)
    hidden = w_in_ref.shape[0]
    seq = x.shape[1]

    # Tiny hoisted constants (single vregs; no (T,T) matrices anywhere).
    lane = jax.lax.broadcasted_iota(jnp.int32, (1, seq), 1)        # (1, T)
    inv_cnt = 1.0 / ((lane.astype(f32) + 1.0) * float(hidden))     # 1/entry_cnt

    pc = pc_ref[...]                               # (H, 12) packed per-channel params

    def col(k):
        return pc[:, k:k + 1]                      # (H, 1)

    def prelu(v, a):
        return jnp.maximum(v, 0.0) + a * jnp.minimum(v, 0.0)

    def shift_right(v, s):
        # Causal time shift: out[:, t] = v[:, t - s], zeros for t < s.
        # XLU lane rotate + mask instead of a (T,T) shift-matrix matmul.
        rolled = pltpu.roll(v, shift=s, axis=1)
        return rolled * (lane >= s).astype(f32)

    def cumsum_lanes(v):
        # Inclusive prefix-sum along time: log2(T) roll + mask + add steps
        # (XLU + VPU, exact f32). v is a (1, T) statistics row.
        out = v
        s = 1
        while s < seq:
            out = out + pltpu.roll(out, shift=s, axis=1) * (lane >= s).astype(f32)
            s *= 2
        return out

    def cln(v, gain, bias):
        # Cumulative layer norm over (all channels, time <= t). Channels are
        # reduced BEFORE the cumulative sum, so running stats are (1, T).
        cum_sum = cumsum_lanes(jnp.sum(v, axis=0, keepdims=True))
        cum_pow = cumsum_lanes(jnp.sum(v * v, axis=0, keepdims=True))
        mean = cum_sum * inv_cnt
        # == (cum_pow - 2*mean*cum_sum)/cnt + mean^2, with no divides.
        var = cum_pow * inv_cnt - mean * mean
        inv_std = jax.lax.rsqrt(var + eps)
        return (v - mean) * inv_std * gain + bias

    def causal_dconv(v, path, bias):
        # Causal dilated conv, kernel size 3; the left pad of 2*dilation zeros
        # is realized as zero-filled right shifts (taps 2, 1, 0 <-> shifts
        # 0, dilation, 2*dilation).
        out = bias + jnp.dot(wd_ref[path, 2], v, preferred_element_type=f32)
        out = out + jnp.dot(wd_ref[path, 1], shift_right(v, dilation),
                            preferred_element_type=f32)
        out = out + jnp.dot(wd_ref[path, 0], shift_right(v, 2 * dilation),
                            preferred_element_type=f32)
        return out

    # conv_in (1x1 conv == matmul over channels).
    h = jnp.dot(w_in_ref[...], x, preferred_element_type=f32) + col(0)

    # GLU-TCM block: two parallel paths, sigmoid gate.
    p1 = causal_dconv(cln(prelu(h, col(1)), col(2), col(3)), 0, col(4))
    p2 = causal_dconv(cln(prelu(h, col(5)), col(6), col(7)), 1, col(8))
    gated = p1 * pl.reciprocal(1.0 + jnp.exp(-p2), approx=True)

    # Output path: PReLU -> cumulative LN -> conv_out (1x1) -> residual.
    n3 = cln(prelu(gated, col(9)), col(10), col(11))
    y = (jnp.dot(w_out_ref[...], n3, preferred_element_type=f32)
         + b_out_ref[...] + x)

    # Single full-tile, lane-dense store.
    o_ref[0] = y.astype(o_ref.dtype)


def stcm_block(x, params, *, dilation, eps=1e-5):
    """Fused forward pass of STCMBlock for x of shape (B, C, T)."""
    b, c, t = x.shape

    # Pack the 12 tiny (H,1) per-channel vectors into one (H,12) array and the
    # two dilated-conv weights into one (2,3,H,H) array: 6 inputs instead of 18.
    pc = jnp.concatenate([params[k] for k in _PC_COLS], axis=1)
    wd = jnp.stack([params["wd1"], params["wd2"]], axis=0)

    def full_spec(arr):
        nd = arr.ndim
        return pl.BlockSpec(arr.shape, lambda i, _nd=nd: (0,) * _nd)

    kernel = functools.partial(_stcm_kernel, dilation=dilation, eps=eps)

    # grid=(B,), "parallel": v7x's two TensorCores split the batch; per-step
    # overhead is negligible at these sizes (see TODO at top for large B / T).
    return pl.pallas_call(
        kernel,
        out_shape=jax.ShapeDtypeStruct((b, c, t), x.dtype),
        grid=(b,),
        in_specs=[pl.BlockSpec((1, c, t), lambda i: (i, 0, 0)),
                  full_spec(params["w_in"]),
                  full_spec(wd),
                  full_spec(params["w_out"]),
                  full_spec(pc),
                  full_spec(params["b_out"])],
        out_specs=pl.BlockSpec((1, c, t), lambda i: (i, 0, 0)),
        compiler_params=pltpu.CompilerParams(
            dimension_semantics=("parallel",)),
    )(x, params["w_in"], wd, params["w_out"], pc, params["b_out"])


# ---------------------------- pure-JAX reference ----------------------------

_P_HI = jax.lax.Precision.HIGHEST   # reference is computed at full f32 precision


def _prelu_ref(x, a):
    return jnp.maximum(x, 0.0) + a[None, :, :] * jnp.minimum(x, 0.0)


def _cln_ref(x, gain, bias, eps):
    _, c, t = x.shape
    cum_sum = jnp.cumsum(jnp.sum(x, axis=1), axis=1)
    cum_pow = jnp.cumsum(jnp.sum(x * x, axis=1), axis=1)
    cnt = (jnp.arange(1, t + 1, dtype=x.dtype) * c).reshape(1, t)
    mean = cum_sum / cnt
    var = (cum_pow - 2.0 * mean * cum_sum) / cnt + mean * mean
    std = jnp.sqrt(var + eps)
    xn = (x - mean[:, None, :]) / std[:, None, :]
    return xn * gain[None, :, :] + bias[None, :, :]


def _dconv_ref(x, w, b_, dilation):
    # w: (3, out, in); causal left pad of 2*dilation zeros.
    pad = 2 * dilation
    t = x.shape[-1]
    xp = jnp.pad(x, ((0, 0), (0, 0), (pad, 0)))
    out = b_[None, :, :]
    for k in range(3):
        out = out + jnp.einsum(
            "oi,bit->bot", w[k], xp[:, :, k * dilation:k * dilation + t],
            precision=_P_HI)
    return out


def _stcm_ref(x, p, dilation, eps=1e-5):
    h = jnp.einsum("hc,bct->bht", p["w_in"], x, precision=_P_HI) + p["b_in"][None, :, :]
    n1 = _cln_ref(_prelu_ref(h, p["a1"]), p["g1"], p["be1"], eps)
    o1 = _dconv_ref(n1, p["wd1"], p["bd1"], dilation)
    n2 = _cln_ref(_prelu_ref(h, p["a2"]), p["g2"], p["be2"], eps)
    o2 = _dconv_ref(n2, p["wd2"], p["bd2"], dilation)
    g = o1 * jax.nn.sigmoid(o2)
    n3 = _cln_ref(_prelu_ref(g, p["a3"]), p["g3"], p["be3"], eps)
    y = jnp.einsum("ch,bht->bct", p["w_out"], n3, precision=_P_HI) + p["b_out"][None, :, :]
    return y + x


if __name__ == "__main__":
    # Small shapes consistent with the module (channels > hidden, causal conv).
    B, C, H, T = 2, 64, 32, 128
    dilation = 2

    key = jax.random.PRNGKey(0)
    ks = jax.random.split(key, 16)

    def nrm(k, shape, scale):
        return (scale * jax.random.normal(k, shape)).astype(jnp.float32)

    # Dilated-conv weights are stored as (kernel_tap, out_ch, in_ch), i.e. the
    # PyTorch (out, in, k) weight permuted with .permute(2, 0, 1).
    params = {
        "w_in": nrm(ks[0], (H, C), C ** -0.5),
        "b_in": nrm(ks[1], (H, 1), 0.1),
        "a1": jnp.full((H, 1), 0.25, jnp.float32),
        "g1": 1.0 + nrm(ks[2], (H, 1), 0.1),
        "be1": nrm(ks[3], (H, 1), 0.1),
        "wd1": nrm(ks[4], (3, H, H), (3 * H) ** -0.5),
        "bd1": nrm(ks[5], (H, 1), 0.1),
        "a2": jnp.full((H, 1), 0.25, jnp.float32),
        "g2": 1.0 + nrm(ks[6], (H, 1), 0.1),
        "be2": nrm(ks[7], (H, 1), 0.1),
        "wd2": nrm(ks[8], (3, H, H), (3 * H) ** -0.5),
        "bd2": nrm(ks[9], (H, 1), 0.1),
        "a3": jnp.full((H, 1), 0.25, jnp.float32),
        "g3": 1.0 + nrm(ks[10], (H, 1), 0.1),
        "be3": nrm(ks[11], (H, 1), 0.1),
        "w_out": nrm(ks[12], (C, H), H ** -0.5),
        "b_out": nrm(ks[13], (C, 1), 0.1),
    }
    x = jax.random.normal(ks[14], (B, C, T), dtype=jnp.float32)

    out = stcm_block(x, params, dilation=dilation)
    out = jax.block_until_ready(out)

    ref = _stcm_ref(x, params, dilation)

    assert out.shape == (B, C, T), out.shape
    assert out.dtype == x.dtype
    # Weight matmuls in the kernel run at default (single-pass bf16) precision
    # with f32 accumulation; the reference runs at full f32 precision, so allow
    # a slightly wider tolerance than pure-f32 round-off.
    max_err = float(jnp.max(jnp.abs(out - ref)))
    assert jnp.allclose(out, ref, atol=2e-2, rtol=2e-2), f"max abs err {max_err}"

    print("KERNEL_OK")
</pallas_src>

<mosaic_0001>
module attributes {stable_mosaic.version = 11 : i64} {
  func.func @_stcm_kernel(%arg0: i32, %arg1: memref<1x64x128xf32, #tpu.memory_space<vmem>>, %arg2: memref<32x64xf32, #tpu.memory_space<vmem>>, %arg3: memref<2x3x32x32xf32, #tpu.memory_space<vmem>>, %arg4: memref<64x32xf32, #tpu.memory_space<vmem>>, %arg5: memref<32x12xf32, #tpu.memory_space<vmem>>, %arg6: memref<64x1xf32, #tpu.memory_space<vmem>>, %arg7: memref<1x64x128xf32, #tpu.memory_space<vmem>>) attributes {dimension_semantics = [#tpu.dimension_semantics<parallel>], iteration_bounds = array<i64: 2>, scalar_prefetch = 0 : i64, scratch_operands = 0 : i64, tpu.core_type = #tpu.core_type<tc>, window_params = [{transform_indices = @transform_0, window_bounds = array<i64: 1, 64, 128>}, {pipeline_mode = #tpu.pipeline_mode<synchronous>, transform_indices = @transform_1, window_bounds = array<i64: 32, 64>}, {pipeline_mode = #tpu.pipeline_mode<synchronous>, transform_indices = @transform_2, window_bounds = array<i64: 2, 3, 32, 32>}, {pipeline_mode = #tpu.pipeline_mode<synchronous>, transform_indices = @transform_3, window_bounds = array<i64: 64, 32>}, {pipeline_mode = #tpu.pipeline_mode<synchronous>, transform_indices = @transform_4, window_bounds = array<i64: 32, 12>}, {pipeline_mode = #tpu.pipeline_mode<synchronous>, transform_indices = @transform_5, window_bounds = array<i64: 64, 1>}, {transform_indices = @transform_6, window_bounds = array<i64: 1, 64, 128>}]} {
    %c0 = arith.constant 0 : index
    %c0_0 = arith.constant 0 : index
    %c0_1 = arith.constant 0 : index
    %0 = vector.load %arg1[%c0, %c0_0, %c0_1] : memref<1x64x128xf32, #tpu.memory_space<vmem>>, vector<1x64x128xf32>
    %1 = vector.shape_cast %0 : vector<1x64x128xf32> to vector<64x128xf32>
    %2 = tpu.iota {dimensions = array<i32: 1>} : vector<1x128xi32>
    %3 = arith.sitofp %2 : vector<1x128xi32> to vector<1x128xf32>
    %cst = arith.constant 1.000000e+00 : f32
    %4 = vector.broadcast %cst : f32 to vector<1x128xf32>
    %5 = arith.addf %3, %4 : vector<1x128xf32>
    %cst_2 = arith.constant 3.200000e+01 : f32
    %6 = vector.broadcast %cst_2 : f32 to vector<1x128xf32>
    %7 = arith.mulf %5, %6 : vector<1x128xf32>
    %cst_3 = arith.constant 1.000000e+00 : f32
    %8 = vector.broadcast %cst_3 : f32 to vector<1x128xf32>
    %9 = arith.divf %8, %7 : vector<1x128xf32>
    %c0_4 = arith.constant 0 : index
    %c0_5 = arith.constant 0 : index
    %10 = vector.load %arg5[%c0_4, %c0_5] : memref<32x12xf32, #tpu.memory_space<vmem>>, vector<32x12xf32>
    %c0_6 = arith.constant 0 : index
    %c0_7 = arith.constant 0 : index
    %11 = vector.load %arg2[%c0_6, %c0_7] : memref<32x64xf32, #tpu.memory_space<vmem>>, vector<32x64xf32>
    %cst_8 = arith.constant dense<0.000000e+00> : vector<32x128xf32>
    %12 = tpu.matmul %11, %1, %cst_8 {dimension_numbers = #tpu.dot_dimension_numbers<[1], [0], [0], [1], [0, 0, 1, 1], [], []>} : vector<32x64xf32>, vector<64x128xf32>, vector<32x128xf32> -> vector<32x128xf32>
    %13 = vector.extract_strided_slice %10 {offsets = [0, 0], sizes = [32, 1], strides = [1, 1]} : vector<32x12xf32> to vector<32x1xf32>
    %14 = vector.broadcast %13 : vector<32x1xf32> to vector<32x128xf32>
    %15 = arith.addf %12, %14 : vector<32x128xf32>
    %16 = vector.extract_strided_slice %10 {offsets = [0, 1], sizes = [32, 1], strides = [1, 1]} : vector<32x12xf32> to vector<32x1xf32>
    %cst_9 = arith.constant 0.000000e+00 : f32
    %17 = vector.broadcast %cst_9 : f32 to vector<32x128xf32>
    %18 = arith.maximumf %15, %17 : vector<32x128xf32>
    %cst_10 = arith.constant 0.000000e+00 : f32
    %19 = vector.broadcast %cst_10 : f32 to vector<32x128xf32>
    %20 = arith.minimumf %15, %19 : vector<32x128xf32>
    %21 = vector.broadcast %16 : vector<32x1xf32> to vector<32x128xf32>
    %22 = arith.mulf %21, %20 : vector<32x128xf32>
    %23 = arith.addf %18, %22 : vector<32x128xf32>
    %24 = vector.extract_strided_slice %10 {offsets = [0, 2], sizes = [32, 1], strides = [1, 1]} : vector<32x12xf32> to vector<32x1xf32>
    %25 = vector.extract_strided_slice %10 {offsets = [0, 3], sizes = [32, 1], strides = [1, 1]} : vector<32x12xf32> to vector<32x1xf32>
    %cst_11 = arith.constant dense<0.000000e+00> : vector<128xf32>
    %26 = vector.multi_reduction <add>, %23, %cst_11 [0] : vector<32x128xf32> to vector<128xf32>
    %27 = vector.shape_cast %26 : vector<128xf32> to vector<1x128xf32>
    %c1_i32 = arith.constant 1 : i32
    %28 = tpu.dynamic_rotate %27 by %c1_i32 dim 1 : vector<1x128xf32>, i32 -> vector<1x128xf32>
    %c1_i32_12 = arith.constant 1 : i32
    %29 = vector.broadcast %c1_i32_12 : i32 to vector<1x128xi32>
    %30 = arith.cmpi sge, %2, %29 : vector<1x128xi32>
    %31 = arith.extui %30 : vector<1x128xi1> to vector<1x128xi32>
    %32 = arith.sitofp %31 : vector<1x128xi32> to vector<1x128xf32>
    %33 = arith.mulf %28, %32 : vector<1x128xf32>
    %34 = arith.addf %27, %33 : vector<1x128xf32>
    %c2_i32 = arith.constant 2 : i32
    %35 = tpu.dynamic_rotate %34 by %c2_i32 dim 1 : vector<1x128xf32>, i32 -> vector<1x128xf32>
    %c2_i32_13 = arith.constant 2 : i32
    %36 = vector.broadcast %c2_i32_13 : i32 to vector<1x128xi32>
    %37 = arith.cmpi sge, %2, %36 : vector<1x128xi32>
    %38 = arith.extui %37 : vector<1x128xi1> to vector<1x128xi32>
    %39 = arith.sitofp %38 : vector<1x128xi32> to vector<1x128xf32>
    %40 = arith.mulf %35, %39 : vector<1x128xf32>
    %41 = arith.addf %34, %40 : vector<1x128xf32>
    %c4_i32 = arith.constant 4 : i32
    %42 = tpu.dynamic_rotate %41 by %c4_i32 dim 1 : vector<1x128xf32>, i32 -> vector<1x128xf32>
    %c4_i32_14 = arith.constant 4 : i32
    %43 = vector.broadcast %c4_i32_14 : i32 to vector<1x128xi32>
    %44 = arith.cmpi sge, %2, %43 : vector<1x128xi32>
    %45 = arith.extui %44 : vector<1x128xi1> to vector<1x128xi32>
    %46 = arith.sitofp %45 : vector<1x128xi32> to vector<1x128xf32>
    %47 = arith.mulf %42, %46 : vector<1x128xf32>
    %48 = arith.addf %41, %47 : vector<1x128xf32>
    %c8_i32 = arith.constant 8 : i32
    %49 = tpu.dynamic_rotate %48 by %c8_i32 dim 1 : vector<1x128xf32>, i32 -> vector<1x128xf32>
    %c8_i32_15 = arith.constant 8 : i32
    %50 = vector.broadcast %c8_i32_15 : i32 to vector<1x128xi32>
    %51 = arith.cmpi sge, %2, %50 : vector<1x128xi32>
    %52 = arith.extui %51 : vector<1x128xi1> to vector<1x128xi32>
    %53 = arith.sitofp %52 : vector<1x128xi32> to vector<1x128xf32>
    %54 = arith.mulf %49, %53 : vector<1x128xf32>
    %55 = arith.addf %48, %54 : vector<1x128xf32>
    %c16_i32 = arith.constant 16 : i32
    %56 = tpu.dynamic_rotate %55 by %c16_i32 dim 1 : vector<1x128xf32>, i32 -> vector<1x128xf32>
    %c16_i32_16 = arith.constant 16 : i32
    %57 = vector.broadcast %c16_i32_16 : i32 to vector<1x128xi32>
    %58 = arith.cmpi sge, %2, %57 : vector<1x128xi32>
    %59 = arith.extui %58 : vector<1x128xi1> to vector<1x128xi32>
    %60 = arith.sitofp %59 : vector<1x128xi32> to vector<1x128xf32>
    %61 = arith.mulf %56, %60 : vector<1x128xf32>
    %62 = arith.addf %55, %61 : vector<1x128xf32>
    %c32_i32 = arith.constant 32 : i32
    %63 = tpu.dynamic_rotate %62 by %c32_i32 dim 1 : vector<1x128xf32>, i32 -> vector<1x128xf32>
    %c32_i32_17 = arith.constant 32 : i32
    %64 = vector.broadcast %c32_i32_17 : i32 to vector<1x128xi32>
    %65 = arith.cmpi sge, %2, %64 : vector<1x128xi32>
    %66 = arith.extui %65 : vector<1x128xi1> to vector<1x128xi32>
    %67 = arith.sitofp %66 : vector<1x128xi32> to vector<1x128xf32>
    %68 = arith.mulf %63, %67 : vector<1x128xf32>
    %69 = arith.addf %62, %68 : vector<1x128xf32>
    %c64_i32 = arith.constant 64 : i32
    %70 = tpu.dynamic_rotate %69 by %c64_i32 dim 1 : vector<1x128xf32>, i32 -> vector<1x128xf32>
    %c64_i32_18 = arith.constant 64 : i32
    %71 = vector.broadcast %c64_i32_18 : i32 to vector<1x128xi32>
    %72 = arith.cmpi sge, %2, %71 : vector<1x128xi32>
    %73 = arith.extui %72 : vector<1x128xi1> to vector<1x128xi32>
    %74 = arith.sitofp %73 : vector<1x128xi32> to vector<1x128xf32>
    %75 = arith.mulf %70, %74 : vector<1x128xf32>
    %76 = arith.addf %69, %75 : vector<1x128xf32>
    %77 = arith.mulf %23, %23 : vector<32x128xf32>
    %cst_19 = arith.constant dense<0.000000e+00> : vector<128xf32>
    %78 = vector.multi_reduction <add>, %77, %cst_19 [0] : vector<32x128xf32> to vector<128xf32>
    %79 = vector.shape_cast %78 : vector<128xf32> to vector<1x128xf32>
    %c1_i32_20 = arith.constant 1 : i32
    %80 = tpu.dynamic_rotate %79 by %c1_i32_20 dim 1 : vector<1x128xf32>, i32 -> vector<1x128xf32>
    %c1_i32_21 = arith.constant 1 : i32
    %81 = vector.broadcast %c1_i32_21 : i32 to vector<1x128xi32>
    %82 = arith.cmpi sge, %2, %81 : vector<1x128xi32>
    %83 = arith.extui %82 : vector<1x128xi1> to vector<1x128xi32>
    %84 = arith.sitofp %83 : vector<1x128xi32> to vector<1x128xf32>
    %85 = arith.mulf %80, %84 : vector<1x128xf32>
    %86 = arith.addf %79, %85 : vector<1x128xf32>
    %c2_i32_22 = arith.constant 2 : i32
    %87 = tpu.dynamic_rotate %86 by %c2_i32_22 dim 1 : vector<1x128xf32>, i32 -> vector<1x128xf32>
    %c2_i32_23 = arith.constant 2 : i32
    %88 = vector.broadcast %c2_i32_23 : i32 to vector<1x128xi32>
    %89 = arith.cmpi sge, %2, %88 : vector<1x128xi32>
    %90 = arith.extui %89 : vector<1x128xi1> to vector<1x128xi32>
    %91 = arith.sitofp %90 : vector<1x128xi32> to vector<1x128xf32>
    %92 = arith.mulf %87, %91 : vector<1x128xf32>
    %93 = arith.addf %86, %92 : vector<1x128xf32>
    %c4_i32_24 = arith.constant 4 : i32
    %94 = tpu.dynamic_rotate %93 by %c4_i32_24 dim 1 : vector<1x128xf32>, i32 -> vector<1x128xf32>
    %c4_i32_25 = arith.constant 4 : i32
    %95 = vector.broadcast %c4_i32_25 : i32 to vector<1x128xi32>
    %96 = arith.cmpi sge, %2, %95 : vector<1x128xi32>
    %97 = arith.extui %96 : vector<1x128xi1> to vector<1x128xi32>
    %98 = arith.sitofp %97 : vector<1x128xi32> to vector<1x128xf32>
    %99 = arith.mulf %94, %98 : vector<1x128xf32>
    %100 = arith.addf %93, %99 : vector<1x128xf32>
    %c8_i32_26 = arith.constant 8 : i32
    %101 = tpu.dynamic_rotate %100 by %c8_i32_26 dim 1 : vector<1x128xf32>, i32 -> vector<1x128xf32>
    %c8_i32_27 = arith.constant 8 : i32
    %102 = vector.broadcast %c8_i32_27 : i32 to vector<1x128xi32>
    %103 = arith.cmpi sge, %2, %102 : vector<1x128xi32>
    %104 = arith.extui %103 : vector<1x128xi1> to vector<1x128xi32>
    %105 = arith.sitofp %104 : vector<1x128xi32> to vector<1x128xf32>
    %106 = arith.mulf %101, %105 : vector<1x128xf32>
    %107 = arith.addf %100, %106 : vector<1x128xf32>
    %c16_i32_28 = arith.constant 16 : i32
    %108 = tpu.dynamic_rotate %107 by %c16_i32_28 dim 1 : vector<1x128xf32>, i32 -> vector<1x128xf32>
    %c16_i32_29 = arith.constant 16 : i32
    %109 = vector.broadcast %c16_i32_29 : i32 to vector<1x128xi32>
    %110 = arith.cmpi sge, %2, %109 : vector<1x128xi32>
    %111 = arith.extui %110 : vector<1x128xi1> to vector<1x128xi32>
    %112 = arith.sitofp %111 : vector<1x128xi32> to vector<1x128xf32>
    %113 = arith.mulf %108, %112 : vector<1x128xf32>
    %114 = arith.addf %107, %113 : vector<1x128xf32>
    %c32_i32_30 = arith.constant 32 : i32
    %115 = tpu.dynamic_rotate %114 by %c32_i32_30 dim 1 : vector<1x128xf32>, i32 -> vector<1x128xf32>
    %c32_i32_31 = arith.constant 32 : i32
    %116 = vector.broadcast %c32_i32_31 : i32 to vector<1x128xi32>
    %117 = arith.cmpi sge, %2, %116 : vector<1x128xi32>
    %118 = arith.extui %117 : vector<1x128xi1> to vector<1x128xi32>
    %119 = arith.sitofp %118 : vector<1x128xi32> to vector<1x128xf32>
    %120 = arith.mulf %115, %119 : vector<1x128xf32>
    %121 = arith.addf %114, %120 : vector<1x128xf32>
    %c64_i32_32 = arith.constant 64 : i32
    %122 = tpu.dynamic_rotate %121 by %c64_i32_32 dim 1 : vector<1x128xf32>, i32 -> vector<1x128xf32>
    %c64_i32_33 = arith.constant 64 : i32
    %123 = vector.broadcast %c64_i32_33 : i32 to vector<1x128xi32>
    %124 = arith.cmpi sge, %2, %123 : vector<1x128xi32>
    %125 = arith.extui %124 : vector<1x128xi1> to vector<1x128xi32>
    %126 = arith.sitofp %125 : vector<1x128xi32> to vector<1x128xf32>
    %127 = arith.mulf %122, %126 : vector<1x128xf32>
    %128 = arith.addf %121, %127 : vector<1x128xf32>
    %129 = arith.mulf %76, %9 : vector<1x128xf32>
    %130 = arith.mulf %128, %9 : vector<1x128xf32>
    %131 = arith.mulf %129, %129 : vector<1x128xf32>
    %132 = arith.subf %130, %131 : vector<1x128xf32>
    %cst_34 = arith.constant 9.99999974E-6 : f32
    %133 = vector.broadcast %cst_34 : f32 to vector<1x128xf32>
    %134 = arith.addf %132, %133 : vector<1x128xf32>
    %135 = math.rsqrt %134 : vector<1x128xf32>
    %136 = vector.broadcast %129 : vector<1x128xf32> to vector<32x128xf32>
    %137 = arith.subf %23, %136 : vector<32x128xf32>
    %138 = vector.broadcast %135 : vector<1x128xf32> to vector<32x128xf32>
    %139 = arith.mulf %137, %138 : vector<32x128xf32>
    %140 = vector.broadcast %24 : vector<32x1xf32> to vector<32x128xf32>
    %141 = arith.mulf %139, %140 : vector<32x128xf32>
    %142 = vector.broadcast %25 : vector<32x1xf32> to vector<32x128xf32>
    %143 = arith.addf %141, %142 : vector<32x128xf32>
    %144 = vector.extract_strided_slice %10 {offsets = [0, 4], sizes = [32, 1], strides = [1, 1]} : vector<32x12xf32> to vector<32x1xf32>
    %c0_35 = arith.constant 0 : index
    %c2 = arith.constant 2 : index
    %c0_36 = arith.constant 0 : index
    %c0_37 = arith.constant 0 : index
    %145 = vector.load %arg3[%c0_35, %c2, %c0_36, %c0_37] : memref<2x3x32x32xf32, #tpu.memory_space<vmem>>, vector<1x1x32x32xf32>
    %146 = vector.shape_cast %145 : vector<1x1x32x32xf32> to vector<32x32xf32>
    %cst_38 = arith.constant dense<0.000000e+00> : vector<32x128xf32>
    %147 = tpu.matmul %146, %143, %cst_38 {dimension_numbers = #tpu.dot_dimension_numbers<[1], [0], [0], [1], [0, 0, 1, 1], [], []>} : vector<32x32xf32>, vector<32x128xf32>, vector<32x128xf32> -> vector<32x128xf32>
    %148 = vector.broadcast %144 : vector<32x1xf32> to vector<32x128xf32>
    %149 = arith.addf %148, %147 : vector<32x128xf32>
    %c0_39 = arith.constant 0 : index
    %c1 = arith.constant 1 : index
    %c0_40 = arith.constant 0 : index
    %c0_41 = arith.constant 0 : index
    %150 = vector.load %arg3[%c0_39, %c1, %c0_40, %c0_41] : memref<2x3x32x32xf32, #tpu.memory_space<vmem>>, vector<1x1x32x32xf32>
    %151 = vector.shape_cast %150 : vector<1x1x32x32xf32> to vector<32x32xf32>
    %c2_i32_42 = arith.constant 2 : i32
    %152 = tpu.dynamic_rotate %143 by %c2_i32_42 dim 1 : vector<32x128xf32>, i32 -> vector<32x128xf32>
    %c2_i32_43 = arith.constant 2 : i32
    %153 = vector.broadcast %c2_i32_43 : i32 to vector<1x128xi32>
    %154 = arith.cmpi sge, %2, %153 : vector<1x128xi32>
    %155 = arith.extui %154 : vector<1x128xi1> to vector<1x128xi32>
    %156 = arith.sitofp %155 : vector<1x128xi32> to vector<1x128xf32>
    %157 = vector.broadcast %156 : vector<1x128xf32> to vector<32x128xf32>
    %158 = arith.mulf %152, %157 : vector<32x128xf32>
    %cst_44 = arith.constant dense<0.000000e+00> : vector<32x128xf32>
    %159 = tpu.matmul %151, %158, %cst_44 {dimension_numbers = #tpu.dot_dimension_numbers<[1], [0], [0], [1], [0, 0, 1, 1], [], []>} : vector<32x32xf32>, vector<32x128xf32>, vector<32x128xf32> -> vector<32x128xf32>
    %160 = arith.addf %149, %159 : vector<32x128xf32>
    %c0_45 = arith.constant 0 : index
    %c0_46 = arith.constant 0 : index
    %c0_47 = arith.constant 0 : index
    %c0_48 = arith.constant 0 : index
    %161 = vector.load %arg3[%c0_45, %c0_46, %c0_47, %c0_48] : memref<2x3x32x32xf32, #tpu.memory_space<vmem>>, vector<1x1x32x32xf32>
    %162 = vector.shape_cast %161 : vector<1x1x32x32xf32> to vector<32x32xf32>
    %c4_i32_49 = arith.constant 4 : i32
    %163 = tpu.dynamic_rotate %143 by %c4_i32_49 dim 1 : vector<32x128xf32>, i32 -> vector<32x128xf32>
    %c4_i32_50 = arith.constant 4 : i32
    %164 = vector.broadcast %c4_i32_50 : i32 to vector<1x128xi32>
    %165 = arith.cmpi sge, %2, %164 : vector<1x128xi32>
    %166 = arith.extui %165 : vector<1x128xi1> to vector<1x128xi32>
    %167 = arith.sitofp %166 : vector<1x128xi32> to vector<1x128xf32>
    %168 = vector.broadcast %167 : vector<1x128xf32> to vector<32x128xf32>
    %169 = arith.mulf %163, %168 : vector<32x128xf32>
    %cst_51 = arith.constant dense<0.000000e+00> : vector<32x128xf32>
    %170 = tpu.matmul %162, %169, %cst_51 {dimension_numbers = #tpu.dot_dimension_numbers<[1], [0], [0], [1], [0, 0, 1, 1], [], []>} : vector<32x32xf32>, vector<32x128xf32>, vector<32x128xf32> -> vector<32x128xf32>
    %171 = arith.addf %160, %170 : vector<32x128xf32>
    %172 = vector.extract_strided_slice %10 {offsets = [0, 5], sizes = [32, 1], strides = [1, 1]} : vector<32x12xf32> to vector<32x1xf32>
    %cst_52 = arith.constant 0.000000e+00 : f32
    %173 = vector.broadcast %cst_52 : f32 to vector<32x128xf32>
    %174 = arith.maximumf %15, %173 : vector<32x128xf32>
    %cst_53 = arith.constant 0.000000e+00 : f32
    %175 = vector.broadcast %cst_53 : f32 to vector<32x128xf32>
    %176 = arith.minimumf %15, %175 : vector<32x128xf32>
    %177 = vector.broadcast %172 : vector<32x1xf32> to vector<32x128xf32>
    %178 = arith.mulf %177, %176 : vector<32x128xf32>
    %179 = arith.addf %174, %178 : vector<32x128xf32>
    %180 = vector.extract_strided_slice %10 {offsets = [0, 6], sizes = [32, 1], strides = [1, 1]} : vector<32x12xf32> to vector<32x1xf32>
    %181 = vector.extract_strided_slice %10 {offsets = [0, 7], sizes = [32, 1], strides = [1, 1]} : vector<32x12xf32> to vector<32x1xf32>
    %cst_54 = arith.constant dense<0.000000e+00> : vector<128xf32>
    %182 = vector.multi_reduction <add>, %179, %cst_54 [0] : vector<32x128xf32> to vector<128xf32>
    %183 = vector.shape_cast %182 : vector<128xf32> to vector<1x128xf32>
    %c1_i32_55 = arith.constant 1 : i32
    %184 = tpu.dynamic_rotate %183 by %c1_i32_55 dim 1 : vector<1x128xf32>, i32 -> vector<1x128xf32>
    %c1_i32_56 = arith.constant 1 : i32
    %185 = vector.broadcast %c1_i32_56 : i32 to vector<1x128xi32>
    %186 = arith.cmpi sge, %2, %185 : vector<1x128xi32>
    %187 = arith.extui %186 : vector<1x128xi1> to vector<1x128xi32>
    %188 = arith.sitofp %187 : vector<1x128xi32> to vector<1x128xf32>
    %189 = arith.mulf %184, %188 : vector<1x128xf32>
    %190 = arith.addf %183, %189 : vector<1x128xf32>
    %c2_i32_57 = arith.constant 2 : i32
    %191 = tpu.dynamic_rotate %190 by %c2_i32_57 dim 1 : vector<1x128xf32>, i32 -> vector<1x128xf32>
    %c2_i32_58 = arith.constant 2 : i32
    %192 = vector.broadcast %c2_i32_58 : i32 to vector<1x128xi32>
    %193 = arith.cmpi sge, %2, %192 : vector<1x128xi32>
    %194 = arith.extui %193 : vector<1x128xi1> to vector<1x128xi32>
    %195 = arith.sitofp %194 : vector<1x128xi32> to vector<1x128xf32>
    %196 = arith.mulf %191, %195 : vector<1x128xf32>
    %197 = arith.addf %190, %196 : vector<1x128xf32>
    %c4_i32_59 = arith.constant 4 : i32
    %198 = tpu.dynamic_rotate %197 by %c4_i32_59 dim 1 : vector<1x128xf32>, i32 -> vector<1x128xf32>
    %c4_i32_60 = arith.constant 4 : i32
    %199 = vector.broadcast %c4_i32_60 : i32 to vector<1x128xi32>
    %200 = arith.cmpi sge, %2, %199 : vector<1x128xi32>
    %201 = arith.extui %200 : vector<1x128xi1> to vector<1x128xi32>
    %202 = arith.sitofp %201 : vector<1x128xi32> to vector<1x128xf32>
    %203 = arith.mulf %198, %202 : vector<1x128xf32>
    %204 = arith.addf %197, %203 : vector<1x128xf32>
    %c8_i32_61 = arith.constant 8 : i32
    %205 = tpu.dynamic_rotate %204 by %c8_i32_61 dim 1 : vector<1x128xf32>, i32 -> vector<1x128xf32>
    %c8_i32_62 = arith.constant 8 : i32
    %206 = vector.broadcast %c8_i32_62 : i32 to vector<1x128xi32>
    %207 = arith.cmpi sge, %2, %206 : vector<1x128xi32>
    %208 = arith.extui %207 : vector<1x128xi1> to vector<1x128xi32>
    %209 = arith.sitofp %208 : vector<1x128xi32> to vector<1x128xf32>
    %210 = arith.mulf %205, %209 : vector<1x128xf32>
    %211 = arith.addf %204, %210 : vector<1x128xf32>
    %c16_i32_63 = arith.constant 16 : i32
    %212 = tpu.dynamic_rotate %211 by %c16_i32_63 dim 1 : vector<1x128xf32>, i32 -> vector<1x128xf32>
    %c16_i32_64 = arith.constant 16 : i32
    %213 = vector.broadcast %c16_i32_64 : i32 to vector<1x128xi32>
    %214 = arith.cmpi sge, %2, %213 : vector<1x128xi32>
    %215 = arith.extui %214 : vector<1x128xi1> to vector<1x128xi32>
    %216 = arith.sitofp %215 : vector<1x128xi32> to vector<1x128xf32>
    %217 = arith.mulf %212, %216 : vector<1x128xf32>
    %218 = arith.addf %211, %217 : vector<1x128xf32>
    %c32_i32_65 = arith.constant 32 : i32
    %219 = tpu.dynamic_rotate %218 by %c32_i32_65 dim 1 : vector<1x128xf32>, i32 -> vector<1x128xf32>
    %c32_i32_66 = arith.constant 32 : i32
    %220 = vector.broadcast %c32_i32_66 : i32 to vector<1x128xi32>
    %221 = arith.cmpi sge, %2, %220 : vector<1x128xi32>
    %222 = arith.extui %221 : vector<1x128xi1> to vector<1x128xi32>
    %223 = arith.sitofp %222 : vector<1x128xi32> to vector<1x128xf32>
    %224 = arith.mulf %219, %223 : vector<1x128xf32>
    %225 = arith.addf %218, %224 : vector<1x128xf32>
    %c64_i32_67 = arith.constant 64 : i32
    %226 = tpu.dynamic_rotate %225 by %c64_i32_67 dim 1 : vector<1x128xf32>, i32 -> vector<1x128xf32>
    %c64_i32_68 = arith.constant 64 : i32
    %227 = vector.broadcast %c64_i32_68 : i32 to vector<1x128xi32>
    %228 = arith.cmpi sge, %2, %227 : vector<1x128xi32>
    %229 = arith.extui %228 : vector<1x128xi1> to vector<1x128xi32>
    %230 = arith.sitofp %229 : vector<1x128xi32> to vector<1x128xf32>
    %231 = arith.mulf %226, %230 : vector<1x128xf32>
    %232 = arith.addf %225, %231 : vector<1x128xf32>
    %233 = arith.mulf %179, %179 : vector<32x128xf32>
    %cst_69 = arith.constant dense<0.000000e+00> : vector<128xf32>
    %234 = vector.multi_reduction <add>, %233, %cst_69 [0] : vector<32x128xf32> to vector<128xf32>
    %235 = vector.shape_cast %234 : vector<128xf32> to vector<1x128xf32>
    %c1_i32_70 = arith.constant 1 : i32
    %236 = tpu.dynamic_rotate %235 by %c1_i32_70 dim 1 : vector<1x128xf32>, i32 -> vector<1x128xf32>
    %c1_i32_71 = arith.constant 1 : i32
    %237 = vector.broadcast %c1_i32_71 : i32 to vector<1x128xi32>
    %238 = arith.cmpi sge, %2, %237 : vector<1x128xi32>
    %239 = arith.extui %238 : vector<1x128xi1> to vector<1x128xi32>
    %240 = arith.sitofp %239 : vector<1x128xi32> to vector<1x128xf32>
    %241 = arith.mulf %236, %240 : vector<1x128xf32>
    %242 = arith.addf %235, %241 : vector<1x128xf32>
    %c2_i32_72 = arith.constant 2 : i32
    %243 = tpu.dynamic_rotate %242 by %c2_i32_72 dim 1 : vector<1x128xf32>, i32 -> vector<1x128xf32>
    %c2_i32_73 = arith.constant 2 : i32
    %244 = vector.broadcast %c2_i32_73 : i32 to vector<1x128xi32>
    %245 = arith.cmpi sge, %2, %244 : vector<1x128xi32>
    %246 = arith.extui %245 : vector<1x128xi1> to vector<1x128xi32>
    %247 = arith.sitofp %246 : vector<1x128xi32> to vector<1x128xf32>
    %248 = arith.mulf %243, %247 : vector<1x128xf32>
    %249 = arith.addf %242, %248 : vector<1x128xf32>
    %c4_i32_74 = arith.constant 4 : i32
    %250 = tpu.dynamic_rotate %249 by %c4_i32_74 dim 1 : vector<1x128xf32>, i32 -> vector<1x128xf32>
    %c4_i32_75 = arith.constant 4 : i32
    %251 = vector.broadcast %c4_i32_75 : i32 to vector<1x128xi32>
    %252 = arith.cmpi sge, %2, %251 : vector<1x128xi32>
    %253 = arith.extui %252 : vector<1x128xi1> to vector<1x128xi32>
    %254 = arith.sitofp %253 : vector<1x128xi32> to vector<1x128xf32>
    %255 = arith.mulf %250, %254 : vector<1x128xf32>
    %256 = arith.addf %249, %255 : vector<1x128xf32>
    %c8_i32_76 = arith.constant 8 : i32
    %257 = tpu.dynamic_rotate %256 by %c8_i32_76 dim 1 : vector<1x128xf32>, i32 -> vector<1x128xf32>
    %c8_i32_77 = arith.constant 8 : i32
    %258 = vector.broadcast %c8_i32_77 : i32 to vector<1x128xi32>
    %259 = arith.cmpi sge, %2, %258 : vector<1x128xi32>
    %260 = arith.extui %259 : vector<1x128xi1> to vector<1x128xi32>
    %261 = arith.sitofp %260 : vector<1x128xi32> to vector<1x128xf32>
    %262 = arith.mulf %257, %261 : vector<1x128xf32>
    %263 = arith.addf %256, %262 : vector<1x128xf32>
    %c16_i32_78 = arith.constant 16 : i32
    %264 = tpu.dynamic_rotate %263 by %c16_i32_78 dim 1 : vector<1x128xf32>, i32 -> vector<1x128xf32>
    %c16_i32_79 = arith.constant 16 : i32
    %265 = vector.broadcast %c16_i32_79 : i32 to vector<1x128xi32>
    %266 = arith.cmpi sge, %2, %265 : vector<1x128xi32>
    %267 = arith.extui %266 : vector<1x128xi1> to vector<1x128xi32>
    %268 = arith.sitofp %267 : vector<1x128xi32> to vector<1x128xf32>
    %269 = arith.mulf %264, %268 : vector<1x128xf32>
    %270 = arith.addf %263, %269 : vector<1x128xf32>
    %c32_i32_80 = arith.constant 32 : i32
    %271 = tpu.dynamic_rotate %270 by %c32_i32_80 dim 1 : vector<1x128xf32>, i32 -> vector<1x128xf32>
    %c32_i32_81 = arith.constant 32 : i32
    %272 = vector.broadcast %c32_i32_81 : i32 to vector<1x128xi32>
    %273 = arith.cmpi sge, %2, %272 : vector<1x128xi32>
    %274 = arith.extui %273 : vector<1x128xi1> to vector<1x128xi32>
    %275 = arith.sitofp %274 : vector<1x128xi32> to vector<1x128xf32>
    %276 = arith.mulf %271, %275 : vector<1x128xf32>
    %277 = arith.addf %270, %276 : vector<1x128xf32>
    %c64_i32_82 = arith.constant 64 : i32
    %278 = tpu.dynamic_rotate %277 by %c64_i32_82 dim 1 : vector<1x128xf32>, i32 -> vector<1x128xf32>
    %c64_i32_83 = arith.constant 64 : i32
    %279 = vector.broadcast %c64_i32_83 : i32 to vector<1x128xi32>
    %280 = arith.cmpi sge, %2, %279 : vector<1x128xi32>
    %281 = arith.extui %280 : vector<1x128xi1> to vector<1x128xi32>
    %282 = arith.sitofp %281 : vector<1x128xi32> to vector<1x128xf32>
    %283 = arith.mulf %278, %282 : vector<1x128xf32>
    %284 = arith.addf %277, %283 : vector<1x128xf32>
    %285 = arith.mulf %232, %9 : vector<1x128xf32>
    %286 = arith.mulf %284, %9 : vector<1x128xf32>
    %287 = arith.mulf %285, %285 : vector<1x128xf32>
    %288 = arith.subf %286, %287 : vector<1x128xf32>
    %cst_84 = arith.constant 9.99999974E-6 : f32
    %289 = vector.broadcast %cst_84 : f32 to vector<1x128xf32>
    %290 = arith.addf %288, %289 : vector<1x128xf32>
    %291 = math.rsqrt %290 : vector<1x128xf32>
    %292 = vector.broadcast %285 : vector<1x128xf32> to vector<32x128xf32>
    %293 = arith.subf %179, %292 : vector<32x128xf32>
    %294 = vector.broadcast %291 : vector<1x128xf32> to vector<32x128xf32>
    %295 = arith.mulf %293, %294 : vector<32x128xf32>
    %296 = vector.broadcast %180 : vector<32x1xf32> to vector<32x128xf32>
    %297 = arith.mulf %295, %296 : vector<32x128xf32>
    %298 = vector.broadcast %181 : vector<32x1xf32> to vector<32x128xf32>
    %299 = arith.addf %297, %298 : vector<32x128xf32>
    %300 = vector.extract_strided_slice %10 {offsets = [0, 8], sizes = [32, 1], strides = [1, 1]} : vector<32x12xf32> to vector<32x1xf32>
    %c1_85 = arith.constant 1 : index
    %c2_86 = arith.constant 2 : index
    %c0_87 = arith.constant 0 : index
    %c0_88 = arith.constant 0 : index
    %301 = vector.load %arg3[%c1_85, %c2_86, %c0_87, %c0_88] : memref<2x3x32x32xf32, #tpu.memory_space<vmem>>, vector<1x1x32x32xf32>
    %302 = vector.shape_cast %301 : vector<1x1x32x32xf32> to vector<32x32xf32>
    %cst_89 = arith.constant dense<0.000000e+00> : vector<32x128xf32>
    %303 = tpu.matmul %302, %299, %cst_89 {dimension_numbers = #tpu.dot_dimension_numbers<[1], [0], [0], [1], [0, 0, 1, 1], [], []>} : vector<32x32xf32>, vector<32x128xf32>, vector<32x128xf32> -> vector<32x128xf32>
    %304 = vector.broadcast %300 : vector<32x1xf32> to vector<32x128xf32>
    %305 = arith.addf %304, %303 : vector<32x128xf32>
    %c1_90 = arith.constant 1 : index
    %c1_91 = arith.constant 1 : index
    %c0_92 = arith.constant 0 : index
    %c0_93 = arith.constant 0 : index
    %306 = vector.load %arg3[%c1_90, %c1_91, %c0_92, %c0_93] : memref<2x3x32x32xf32, #tpu.memory_space<vmem>>, vector<1x1x32x32xf32>
    %307 = vector.shape_cast %306 : vector<1x1x32x32xf32> to vector<32x32xf32>
    %c2_i32_94 = arith.constant 2 : i32
    %308 = tpu.dynamic_rotate %299 by %c2_i32_94 dim 1 : vector<32x128xf32>, i32 -> vector<32x128xf32>
    %c2_i32_95 = arith.constant 2 : i32
    %309 = vector.broadcast %c2_i32_95 : i32 to vector<1x128xi32>
    %310 = arith.cmpi sge, %2, %309 : vector<1x128xi32>
    %311 = arith.extui %310 : vector<1x128xi1> to vector<1x128xi32>
    %312 = arith.sitofp %311 : vector<1x128xi32> to vector<1x128xf32>
    %313 = vector.broadcast %312 : vector<1x128xf32> to vector<32x128xf32>
    %314 = arith.mulf %308, %313 : vector<32x128xf32>
    %cst_96 = arith.constant dense<0.000000e+00> : vector<32x128xf32>
    %315 = tpu.matmul %307, %314, %cst_96 {dimension_numbers = #tpu.dot_dimension_numbers<[1], [0], [0], [1], [0, 0, 1, 1], [], []>} : vector<32x32xf32>, vector<32x128xf32>, vector<32x128xf32> -> vector<32x128xf32>
    %316 = arith.addf %305, %315 : vector<32x128xf32>
    %c1_97 = arith.constant 1 : index
    %c0_98 = arith.constant 0 : index
    %c0_99 = arith.constant 0 : index
    %c0_100 = arith.constant 0 : index
    %317 = vector.load %arg3[%c1_97, %c0_98, %c0_99, %c0_100] : memref<2x3x32x32xf32, #tpu.memory_space<vmem>>, vector<1x1x32x32xf32>
    %318 = vector.shape_cast %317 : vector<1x1x32x32xf32> to vector<32x32xf32>
    %c4_i32_101 = arith.constant 4 : i32
    %319 = tpu.dynamic_rotate %299 by %c4_i32_101 dim 1 : vector<32x128xf32>, i32 -> vector<32x128xf32>
    %c4_i32_102 = arith.constant 4 : i32
    %320 = vector.broadcast %c4_i32_102 : i32 to vector<1x128xi32>
    %321 = arith.cmpi sge, %2, %320 : vector<1x128xi32>
    %322 = arith.extui %321 : vector<1x128xi1> to vector<1x128xi32>
    %323 = arith.sitofp %322 : vector<1x128xi32> to vector<1x128xf32>
    %324 = vector.broadcast %323 : vector<1x128xf32> to vector<32x128xf32>
    %325 = arith.mulf %319, %324 : vector<32x128xf32>
    %cst_103 = arith.constant dense<0.000000e+00> : vector<32x128xf32>
    %326 = tpu.matmul %318, %325, %cst_103 {dimension_numbers = #tpu.dot_dimension_numbers<[1], [0], [0], [1], [0, 0, 1, 1], [], []>} : vector<32x32xf32>, vector<32x128xf32>, vector<32x128xf32> -> vector<32x128xf32>
    %327 = arith.addf %316, %326 : vector<32x128xf32>
    %cst_104 = arith.constant 0.000000e+00 : f32
    %328 = vector.broadcast %cst_104 : f32 to vector<32x128xf32>
    %329 = arith.subf %328, %327 : vector<32x128xf32>
    %330 = math.exp %329 : vector<32x128xf32>
    %cst_105 = arith.constant 1.000000e+00 : f32
    %331 = vector.broadcast %cst_105 : f32 to vector<32x128xf32>
    %332 = arith.addf %331, %330 : vector<32x128xf32>
    %333 = tpu.reciprocal %332 {approx = true} : vector<32x128xf32> -> vector<32x128xf32>
    %334 = arith.mulf %171, %333 : vector<32x128xf32>
    %335 = vector.extract_strided_slice %10 {offsets = [0, 9], sizes = [32, 1], strides = [1, 1]} : vector<32x12xf32> to vector<32x1xf32>
    %cst_106 = arith.constant 0.000000e+00 : f32
    %336 = vector.broadcast %cst_106 : f32 to vector<32x128xf32>
    %337 = arith.maximumf %334, %336 : vector<32x128xf32>
    %cst_107 = arith.constant 0.000000e+00 : f32
    %338 = vector.broadcast %cst_107 : f32 to vector<32x128xf32>
    %339 = arith.minimumf %334, %338 : vector<32x128xf32>
    %340 = vector.broadcast %335 : vector<32x1xf32> to vector<32x128xf32>
    %341 = arith.mulf %340, %339 : vector<32x128xf32>
    %342 = arith.addf %337, %341 : vector<32x128xf32>
    %343 = vector.extract_strided_slice %10 {offsets = [0, 10], sizes = [32, 1], strides = [1, 1]} : vector<32x12xf32> to vector<32x1xf32>
    %344 = vector.extract_strided_slice %10 {offsets = [0, 11], sizes = [32, 1], strides = [1, 1]} : vector<32x12xf32> to vector<32x1xf32>
    %cst_108 = arith.constant dense<0.000000e+00> : vector<128xf32>
    %345 = vector.multi_reduction <add>, %342, %cst_108 [0] : vector<32x128xf32> to vector<128xf32>
    %346 = vector.shape_cast %345 : vector<128xf32> to vector<1x128xf32>
    %c1_i32_109 = arith.constant 1 : i32
    %347 = tpu.dynamic_rotate %346 by %c1_i32_109 dim 1 : vector<1x128xf32>, i32 -> vector<1x128xf32>
    %c1_i32_110 = arith.constant 1 : i32
    %348 = vector.broadcast %c1_i32_110 : i32 to vector<1x128xi32>
    %349 = arith.cmpi sge, %2, %348 : vector<1x128xi32>
    %350 = arith.extui %349 : vector<1x128xi1> to vector<1x128xi32>
    %351 = arith.sitofp %350 : vector<1x128xi32> to vector<1x128xf32>
    %352 = arith.mulf %347, %351 : vector<1x128xf32>
    %353 = arith.addf %346, %352 : vector<1x128xf32>
    %c2_i32_111 = arith.constant 2 : i32
    %354 = tpu.dynamic_rotate %353 by %c2_i32_111 dim 1 : vector<1x128xf32>, i32 -> vector<1x128xf32>
    %c2_i32_112 = arith.constant 2 : i32
    %355 = vector.broadcast %c2_i32_112 : i32 to vector<1x128xi32>
    %356 = arith.cmpi sge, %2, %355 : vector<1x128xi32>
    %357 = arith.extui %356 : vector<1x128xi1> to vector<1x128xi32>
    %358 = arith.sitofp %357 : vector<1x128xi32> to vector<1x128xf32>
    %359 = arith.mulf %354, %358 : vector<1x128xf32>
    %360 = arith.addf %353, %359 : vector<1x128xf32>
    %c4_i32_113 = arith.constant 4 : i32
    %361 = tpu.dynamic_rotate %360 by %c4_i32_113 dim 1 : vector<1x128xf32>, i32 -> vector<1x128xf32>
    %c4_i32_114 = arith.constant 4 : i32
    %362 = vector.broadcast %c4_i32_114 : i32 to vector<1x128xi32>
    %363 = arith.cmpi sge, %2, %362 : vector<1x128xi32>
    %364 = arith.extui %363 : vector<1x128xi1> to vector<1x128xi32>
    %365 = arith.sitofp %364 : vector<1x128xi32> to vector<1x128xf32>
    %366 = arith.mulf %361, %365 : vector<1x128xf32>
    %367 = arith.addf %360, %366 : vector<1x128xf32>
    %c8_i32_115 = arith.constant 8 : i32
    %368 = tpu.dynamic_rotate %367 by %c8_i32_115 dim 1 : vector<1x128xf32>, i32 -> vector<1x128xf32>
    %c8_i32_116 = arith.constant 8 : i32
    %369 = vector.broadcast %c8_i32_116 : i32 to vector<1x128xi32>
    %370 = arith.cmpi sge, %2, %369 : vector<1x128xi32>
    %371 = arith.extui %370 : vector<1x128xi1> to vector<1x128xi32>
    %372 = arith.sitofp %371 : vector<1x128xi32> to vector<1x128xf32>
    %373 = arith.mulf %368, %372 : vector<1x128xf32>
    %374 = arith.addf %367, %373 : vector<1x128xf32>
    %c16_i32_117 = arith.constant 16 : i32
    %375 = tpu.dynamic_rotate %374 by %c16_i32_117 dim 1 : vector<1x128xf32>, i32 -> vector<1x128xf32>
    %c16_i32_118 = arith.constant 16 : i32
    %376 = vector.broadcast %c16_i32_118 : i32 to vector<1x128xi32>
    %377 = arith.cmpi sge, %2, %376 : vector<1x128xi32>
    %378 = arith.extui %377 : vector<1x128xi1> to vector<1x128xi32>
    %379 = arith.sitofp %378 : vector<1x128xi32> to vector<1x128xf32>
    %380 = arith.mulf %375, %379 : vector<1x128xf32>
    %381 = arith.addf %374, %380 : vector<1x128xf32>
    %c32_i32_119 = arith.constant 32 : i32
    %382 = tpu.dynamic_rotate %381 by %c32_i32_119 dim 1 : vector<1x128xf32>, i32 -> vector<1x128xf32>
    %c32_i32_120 = arith.constant 32 : i32
    %383 = vector.broadcast %c32_i32_120 : i32 to vector<1x128xi32>
    %384 = arith.cmpi sge, %2, %383 : vector<1x128xi32>
    %385 = arith.extui %384 : vector<1x128xi1> to vector<1x128xi32>
    %386 = arith.sitofp %385 : vector<1x128xi32> to vector<1x128xf32>
    %387 = arith.mulf %382, %386 : vector<1x128xf32>
    %388 = arith.addf %381, %387 : vector<1x128xf32>
    %c64_i32_121 = arith.constant 64 : i32
    %389 = tpu.dynamic_rotate %388 by %c64_i32_121 dim 1 : vector<1x128xf32>, i32 -> vector<1x128xf32>
    %c64_i32_122 = arith.constant 64 : i32
    %390 = vector.broadcast %c64_i32_122 : i32 to vector<1x128xi32>
    %391 = arith.cmpi sge, %2, %390 : vector<1x128xi32>
    %392 = arith.extui %391 : vector<1x128xi1> to vector<1x128xi32>
    %393 = arith.sitofp %392 : vector<1x128xi32> to vector<1x128xf32>
    %394 = arith.mulf %389, %393 : vector<1x128xf32>
    %395 = arith.addf %388, %394 : vector<1x128xf32>
    %396 = arith.mulf %342, %342 : vector<32x128xf32>
    %cst_123 = arith.constant dense<0.000000e+00> : vector<128xf32>
    %397 = vector.multi_reduction <add>, %396, %cst_123 [0] : vector<32x128xf32> to vector<128xf32>
    %398 = vector.shape_cast %397 : vector<128xf32> to vector<1x128xf32>
    %c1_i32_124 = arith.constant 1 : i32
    %399 = tpu.dynamic_rotate %398 by %c1_i32_124 dim 1 : vector<1x128xf32>, i32 -> vector<1x128xf32>
    %c1_i32_125 = arith.constant 1 : i32
    %400 = vector.broadcast %c1_i32_125 : i32 to vector<1x128xi32>
    %401 = arith.cmpi sge, %2, %400 : vector<1x128xi32>
    %402 = arith.extui %401 : vector<1x128xi1> to vector<1x128xi32>
    %403 = arith.sitofp %402 : vector<1x128xi32> to vector<1x128xf32>
    %404 = arith.mulf %399, %403 : vector<1x128xf32>
    %405 = arith.addf %398, %404 : vector<1x128xf32>
    %c2_i32_126 = arith.constant 2 : i32
    %406 = tpu.dynamic_rotate %405 by %c2_i32_126 dim 1 : vector<1x128xf32>, i32 -> vector<1x128xf32>
    %c2_i32_127 = arith.constant 2 : i32
    %407 = vector.broadcast %c2_i32_127 : i32 to vector<1x128xi32>
    %408 = arith.cmpi sge, %2, %407 : vector<1x128xi32>
    %409 = arith.extui %408 : vector<1x128xi1> to vector<1x128xi32>
    %410 = arith.sitofp %409 : vector<1x128xi32> to vector<1x128xf32>
    %411 = arith.mulf %406, %410 : vector<1x128xf32>
    %412 = arith.addf %405, %411 : vector<1x128xf32>
    %c4_i32_128 = arith.constant 4 : i32
    %413 = tpu.dynamic_rotate %412 by %c4_i32_128 dim 1 : vector<1x128xf32>, i32 -> vector<1x128xf32>
    %c4_i32_129 = arith.constant 4 : i32
    %414 = vector.broadcast %c4_i32_129 : i32 to vector<1x128xi32>
    %415 = arith.cmpi sge, %2, %414 : vector<1x128xi32>
    %416 = arith.extui %415 : vector<1x128xi1> to vector<1x128xi32>
    %417 = arith.sitofp %416 : vector<1x128xi32> to vector<1x128xf32>
    %418 = arith.mulf %413, %417 : vector<1x128xf32>
    %419 = arith.addf %412, %418 : vector<1x128xf32>
    %c8_i32_130 = arith.constant 8 : i32
    %420 = tpu.dynamic_rotate %419 by %c8_i32_130 dim 1 : vector<1x128xf32>, i32 -> vector<1x128xf32>
    %c8_i32_131 = arith.constant 8 : i32
    %421 = vector.broadcast %c8_i32_131 : i32 to vector<1x128xi32>
    %422 = arith.cmpi sge, %2, %421 : vector<1x128xi32>
    %423 = arith.extui %422 : vector<1x128xi1> to vector<1x128xi32>
    %424 = arith.sitofp %423 : vector<1x128xi32> to vector<1x128xf32>
    %425 = arith.mulf %420, %424 : vector<1x128xf32>
    %426 = arith.addf %419, %425 : vector<1x128xf32>
    %c16_i32_132 = arith.constant 16 : i32
    %427 = tpu.dynamic_rotate %426 by %c16_i32_132 dim 1 : vector<1x128xf32>, i32 -> vector<1x128xf32>
    %c16_i32_133 = arith.constant 16 : i32
    %428 = vector.broadcast %c16_i32_133 : i32 to vector<1x128xi32>
    %429 = arith.cmpi sge, %2, %428 : vector<1x128xi32>
    %430 = arith.extui %429 : vector<1x128xi1> to vector<1x128xi32>
    %431 = arith.sitofp %430 : vector<1x128xi32> to vector<1x128xf32>
    %432 = arith.mulf %427, %431 : vector<1x128xf32>
    %433 = arith.addf %426, %432 : vector<1x128xf32>
    %c32_i32_134 = arith.constant 32 : i32
    %434 = tpu.dynamic_rotate %433 by %c32_i32_134 dim 1 : vector<1x128xf32>, i32 -> vector<1x128xf32>
    %c32_i32_135 = arith.constant 32 : i32
    %435 = vector.broadcast %c32_i32_135 : i32 to vector<1x128xi32>
    %436 = arith.cmpi sge, %2, %435 : vector<1x128xi32>
    %437 = arith.extui %436 : vector<1x128xi1> to vector<1x128xi32>
    %438 = arith.sitofp %437 : vector<1x128xi32> to vector<1x128xf32>
    %439 = arith.mulf %434, %438 : vector<1x128xf32>
    %440 = arith.addf %433, %439 : vector<1x128xf32>
    %c64_i32_136 = arith.constant 64 : i32
    %441 = tpu.dynamic_rotate %440 by %c64_i32_136 dim 1 : vector<1x128xf32>, i32 -> vector<1x128xf32>
    %c64_i32_137 = arith.constant 64 : i32
    %442 = vector.broadcast %c64_i32_137 : i32 to vector<1x128xi32>
    %443 = arith.cmpi sge, %2, %442 : vector<1x128xi32>
    %444 = arith.extui %443 : vector<1x128xi1> to vector<1x128xi32>
    %445 = arith.sitofp %444 : vector<1x128xi32> to vector<1x128xf32>
    %446 = arith.mulf %441, %445 : vector<1x128xf32>
    %447 = arith.addf %440, %446 : vector<1x128xf32>
    %448 = arith.mulf %395, %9 : vector<1x128xf32>
    %449 = arith.mulf %447, %9 : vector<1x128xf32>
    %450 = arith.mulf %448, %448 : vector<1x128xf32>
    %451 = arith.subf %449, %450 : vector<1x128xf32>
    %cst_138 = arith.constant 9.99999974E-6 : f32
    %452 = vector.broadcast %cst_138 : f32 to vector<1x128xf32>
    %453 = arith.addf %451, %452 : vector<1x128xf32>
    %454 = math.rsqrt %453 : vector<1x128xf32>
    %455 = vector.broadcast %448 : vector<1x128xf32> to vector<32x128xf32>
    %456 = arith.subf %342, %455 : vector<32x128xf32>
    %457 = vector.broadcast %454 : vector<1x128xf32> to vector<32x128xf32>
    %458 = arith.mulf %456, %457 : vector<32x128xf32>
    %459 = vector.broadcast %343 : vector<32x1xf32> to vector<32x128xf32>
    %460 = arith.mulf %458, %459 : vector<32x128xf32>
    %461 = vector.broadcast %344 : vector<32x1xf32> to vector<32x128xf32>
    %462 = arith.addf %460, %461 : vector<32x128xf32>
    %c0_139 = arith.constant 0 : index
    %c0_140 = arith.constant 0 : index
    %463 = vector.load %arg4[%c0_139, %c0_140] : memref<64x32xf32, #tpu.memory_space<vmem>>, vector<64x32xf32>
    %cst_141 = arith.constant dense<0.000000e+00> : vector<64x128xf32>
    %464 = tpu.matmul %463, %462, %cst_141 {dimension_numbers = #tpu.dot_dimension_numbers<[1], [0], [0], [1], [0, 0, 1, 1], [], []>} : vector<64x32xf32>, vector<32x128xf32>, vector<64x128xf32> -> vector<64x128xf32>
    %c0_142 = arith.constant 0 : index
    %c0_143 = arith.constant 0 : index
    %465 = vector.load %arg6[%c0_142, %c0_143] : memref<64x1xf32, #tpu.memory_space<vmem>>, vector<64x1xf32>
    %466 = vector.broadcast %465 : vector<64x1xf32> to vector<64x128xf32>
    %467 = arith.addf %464, %466 : vector<64x128xf32>
    %468 = arith.addf %467, %1 : vector<64x128xf32>
    %c0_144 = arith.constant 0 : index
    %c0_145 = arith.constant 0 : index
    %c0_146 = arith.constant 0 : index
    %469 = vector.load %arg7[%c0_144, %c0_145, %c0_146] : memref<1x64x128xf32, #tpu.memory_space<vmem>>, vector<1x64x128xf32>
    %470 = vector.shape_cast %469 : vector<1x64x128xf32> to vector<64x128xf32>
    %471 = vector.shape_cast %468 : vector<64x128xf32> to vector<1x64x128xf32>
    tpu.vector_store %arg7[%c0_144, %c0_145, %c0_146], %471 {strides = array<i32>} : memref<1x64x128xf32, #tpu.memory_space<vmem>>, vector<1x64x128xf32>,
    return
  }
  func.func @transform_0(%arg0: i32) -> (i32, i32, i32) {
    %c0_i32 = arith.constant 0 : i32
    %c0_i32_0 = arith.constant 0 : i32
    %c0_i32_1 = arith.constant 0 : i32
    return %arg0, %c0_i32, %c0_i32_0 : i32, i32, i32
  }
  func.func @transform_1(%arg0: i32) -> (i32, i32) {
    %c0_i32 = arith.constant 0 : i32
    %c0_i32_0 = arith.constant 0 : i32
    %c0_i32_1 = arith.constant 0 : i32
    return %c0_i32, %c0_i32_0 : i32, i32
  }
  func.func @transform_2(%arg0: i32) -> (i32, i32, i32, i32) {
    %c0_i32 = arith.constant 0 : i32
    %c0_i32_0 = arith.constant 0 : i32
    %c0_i32_1 = arith.constant 0 : i32
    %c0_i32_2 = arith.constant 0 : i32
    %c0_i32_3 = arith.constant 0 : i32
    return %c0_i32, %c0_i32_0, %c0_i32_1, %c0_i32_2 : i32, i32, i32, i32
  }
  func.func @transform_3(%arg0: i32) -> (i32, i32) {
    %c0_i32 = arith.constant 0 : i32
    %c0_i32_0 = arith.constant 0 : i32
    %c0_i32_1 = arith.constant 0 : i32
    return %c0_i32, %c0_i32_0 : i32, i32
  }
  func.func @transform_4(%arg0: i32) -> (i32, i32) {
    %c0_i32 = arith.constant 0 : i32
    %c0_i32_0 = arith.constant 0 : i32
    %c0_i32_1 = arith.constant 0 : i32
    return %c0_i32, %c0_i32_0 : i32, i32
  }
  func.func @transform_5(%arg0: i32) -> (i32, i32) {
    %c0_i32 = arith.constant 0 : i32
    %c0_i32_0 = arith.constant 0 : i32
    %c0_i32_1 = arith.constant 0 : i32
    return %c0_i32, %c0_i32_0 : i32, i32
  }
  func.func @transform_6(%arg0: i32) -> (i32, i32, i32) {
    %c0_i32 = arith.constant 0 : i32
    %c0_i32_0 = arith.constant 0 : i32
    %c0_i32_1 = arith.constant 0 : i32
    return %arg0, %c0_i32, %c0_i32_0 : i32, i32, i32
  }
}

</mosaic_0001>

<llo_original>
// kernel: tpu_custom_call.1
$region0: #{tpu_custom_call.1}
  #allocation0 [shape = 'u32[]', space=smem, size = 0x4, offset = 0x4, fixed_abs, tag = 'smem constant byte address 0x4 - core index']
  #allocation1 [shape = 'u32[72,128]{1,0:T(1,128)}', space=vmem, size = 0x9000, scoped, tag = 'internal scratch']
  %s0 = inlined_call_operand.vmem [shape: f32[2,64,128], index: 0, kind: input, shape index: {}]
  %s1 = inlined_call_operand.vmem [shape: f32[32,64], index: 1, kind: input, shape index: {}]
  %s2 = inlined_call_operand.hbm [shape: f32[2,3,32,32], index: 2, kind: input, shape index: {}]
  %s3 = inlined_call_operand.vmem [shape: f32[64,32], index: 3, kind: input, shape index: {}]
  %s4 = inlined_call_operand.vmem [shape: f32[32,12], index: 4, kind: input, shape index: {}]
  %s5 = inlined_call_operand.vmem [shape: f32[64,1], index: 5, kind: input, shape index: {}]
  %s6 = inlined_call_operand.hbm [shape: f32[2,64,128], index: 6, kind: output, shape index: {}]
  %s7 = sld [smem:[#allocation0]]
  $region61: #{tpu_custom_call.1} parent=0
    _
  %s9 = ssub.s32 1, %s7
  %s10 = scalar_select 0, %s9, %s7
  $region1: #{tpu_custom_call.1} parent=0
    #allocation2 [shape = 'u8[98304]{0}', space=vmem, size = 0x18000, scoped, tag = 'input window, operand 2, single buffered']
    #allocation3 [shape = 's32[2]{0}', space=sflag, size = 0x8, scoped, tag = 'scoped memory for tpu_custom_call.1']
    #allocation4 [shape = 's32[2]{0}', space=sflag, size = 0x8, scoped, tag = 'scoped memory for tpu_custom_call.1']
    #allocation5 [shape = 'u8[65536]{0}', space=vmem, size = 0x10000, scoped, tag = 'output window, operand 0']
    %11 = vsyncpa [#allocation3], 0
    %12 = vsyncpa [#allocation4], 0
    %s13 = scalar_lea.sflag [#allocation4], 1
    %14 = vsyncpa %s13, 0
    loop: start=0, step=1, limit=4
    $region2: #{tpu_custom_call.1} parent=1 // loop_pre_header
      _
    $region3: #{tpu_custom_call.1} parent=1 // loop_header
      %s16 = sphi 0, %s20
      %p17 = scmp.ge.s32.totalorder %s16, 4
      %s26 = sphi 0, %s28
      %s29 = sphi 0, %s26
      %s30 = sphi 0, %s29
      %s46 = sphi 0, %s30
      %s50 = sphi 0, %s50
      %s52 = sphi 0, %s50
      %s53 = sphi 0, %s52
      %s67 = sphi 0, %s53
      %s71 = sphi 0, %s71
      %s73 = sphi 0, %s71
      %s74 = sphi 0, %s73
      %s88 = sphi 0, %s74
      %s92 = sphi 0, %s92
      %s94 = sphi 0, %s92
      %s95 = sphi 0, %s94
      %s109 = sphi 0, %s95
      %s113 = sphi 0, %s113
      %s115 = sphi 0, %s113
      %s116 = sphi 0, %s115
      %s130 = sphi 0, %s116
      %s134 = sphi 0, %s134
      %s136 = sphi 0, %s134
      %s137 = sphi 0, %s136
      %s151 = sphi 0, %s137
      %s157 = sphi 0, %s159
      %s160 = sphi 0, %s157
      %s161 = sphi 0, %s160
      %s177 = sphi 0, %s161
    $region4: #{tpu_custom_call.1} parent=1 // loop_header_branch
      %19 = sbr.rel (%p17) target = $region8
    $region5: #{tpu_custom_call.1} parent=1 // loop_body
      %s21 = ssub.s32 %s16, 1
      %s22 = ssub.s32 %s16, 2
      %s23 = sadd.s32 %s16, 1
      %s24 = ssub.s32 %s16, %s23
      %p25 = scmp.eq.s32.totalorder %s24, 0
      %s27 = sadd.s32 %s26, 1
      %s28 = scalar_select %p25, %s26, %s27
      %p31 = pneg %p25
      %p32 = scmp.eq.s32.totalorder %s16, 1
      %p33 = por %p31, %p32
      %p34 = scmp.ne.s32.totalorder %s26, %s29
      %p35 = scmp.eq.s32.totalorder %s16, 0
      %p36 = por %p34, %p35
      %p37 = scmp.ne.s32.totalorder %s26, %s29
      %p38 = scmp.eq.s32.totalorder %s21, 1
      %p39 = por %p37, %p38
      %p40 = scmp.ne.s32.totalorder %s29, %s30
      %p41 = scmp.eq.s32.totalorder %s21, 0
      %p42 = por %p40, %p41
      %p43 = scmp.ne.s32.totalorder %s29, %s30
      %p44 = scmp.eq.s32.totalorder %s22, 1
      %p45 = por %p43, %p44
      %p47 = scmp.ne.s32.totalorder %s30, %s46
      %p48 = scmp.eq.s32.totalorder %s22, 0
      %p49 = por %p47, %p48
      %s51 = sadd.s32 %s50, 1
      %p54 = scmp.eq.s32.totalorder %s16, 1
      %p55 = scmp.ne.s32.totalorder %s50, %s52
      %p56 = scmp.eq.s32.totalorder %s16, 0
      %p57 = por %p55, %p56
      %p58 = scmp.ne.s32.totalorder %s50, %s52
      %p59 = scmp.eq.s32.totalorder %s21, 1
      %p60 = por %p58, %p59
      %p61 = scmp.ne.s32.totalorder %s52, %s53
      %p62 = scmp.eq.s32.totalorder %s21, 0
      %p63 = por %p61, %p62
      %p64 = scmp.ne.s32.totalorder %s52, %s53
      %p65 = scmp.eq.s32.totalorder %s22, 1
      %p66 = por %p64, %p65
      %p68 = scmp.ne.s32.totalorder %s53, %s67
      %p69 = scmp.eq.s32.totalorder %s22, 0
      %p70 = por %p68, %p69
      %s72 = sadd.s32 %s71, 1
      %p75 = scmp.eq.s32.totalorder %s16, 1
      %p76 = scmp.ne.s32.totalorder %s71, %s73
      %p77 = scmp.eq.s32.totalorder %s16, 0
      %p78 = por %p76, %p77
      %p79 = scmp.ne.s32.totalorder %s71, %s73
      %p80 = scmp.eq.s32.totalorder %s21, 1
      %p81 = por %p79, %p80
      %p82 = scmp.ne.s32.totalorder %s73, %s74
      %p83 = scmp.eq.s32.totalorder %s21, 0
      %p84 = por %p82, %p83
      %p85 = scmp.ne.s32.totalorder %s73, %s74
      %p86 = scmp.eq.s32.totalorder %s22, 1
      %p87 = por %p85, %p86
      %p89 = scmp.ne.s32.totalorder %s74, %s88
      %p90 = scmp.eq.s32.totalorder %s22, 0
      %p91 = por %p89, %p90
      %s93 = sadd.s32 %s92, 1
      %p96 = scmp.eq.s32.totalorder %s16, 1
      %p97 = scmp.ne.s32.totalorder %s92, %s94
      %p98 = scmp.eq.s32.totalorder %s16, 0
      %p99 = por %p97, %p98
      %p100 = scmp.ne.s32.totalorder %s92, %s94
      %p101 = scmp.eq.s32.totalorder %s21, 1
      %p102 = por %p100, %p101
      %p103 = scmp.ne.s32.totalorder %s94, %s95
      %p104 = scmp.eq.s32.totalorder %s21, 0
      %p105 = por %p103, %p104
      %p106 = scmp.ne.s32.totalorder %s94, %s95
      %p107 = scmp.eq.s32.totalorder %s22, 1
      %p108 = por %p106, %p107
      %p110 = scmp.ne.s32.totalorder %s95, %s109
      %p111 = scmp.eq.s32.totalorder %s22, 0
      %p112 = por %p110, %p111
      %s114 = sadd.s32 %s113, 1
      %p117 = scmp.eq.s32.totalorder %s16, 1
      %p118 = scmp.ne.s32.totalorder %s113, %s115
      %p119 = scmp.eq.s32.totalorder %s16, 0
      %p120 = por %p118, %p119
      %p121 = scmp.ne.s32.totalorder %s113, %s115
      %p122 = scmp.eq.s32.totalorder %s21, 1
      %p123 = por %p121, %p122
      %p124 = scmp.ne.s32.totalorder %s115, %s116
      %p125 = scmp.eq.s32.totalorder %s21, 0
      %p126 = por %p124, %p125
      %p127 = scmp.ne.s32.totalorder %s115, %s116
      %p128 = scmp.eq.s32.totalorder %s22, 1
      %p129 = por %p127, %p128
      %p131 = scmp.ne.s32.totalorder %s116, %s130
      %p132 = scmp.eq.s32.totalorder %s22, 0
      %p133 = por %p131, %p132
      %s135 = sadd.s32 %s134, 1
      %p138 = scmp.eq.s32.totalorder %s16, 1
      %p139 = scmp.ne.s32.totalorder %s134, %s136
      %p140 = scmp.eq.s32.totalorder %s16, 0
      %p141 = por %p139, %p140
      %p142 = scmp.ne.s32.totalorder %s134, %s136
      %p143 = scmp.eq.s32.totalorder %s21, 1
      %p144 = por %p142, %p143
      %p145 = scmp.ne.s32.totalorder %s136, %s137
      %p146 = scmp.eq.s32.totalorder %s21, 0
      %p147 = por %p145, %p146
      %p148 = scmp.ne.s32.totalorder %s136, %s137
      %p149 = scmp.eq.s32.totalorder %s22, 1
      %p150 = por %p148, %p149
      %p152 = scmp.ne.s32.totalorder %s137, %s151
      %p153 = scmp.eq.s32.totalorder %s22, 0
      %p154 = por %p152, %p153
      %s155 = ssub.s32 %s16, %s23
      %p156 = scmp.eq.s32.totalorder %s155, 0
      %s158 = sadd.s32 %s157, 1
      %s159 = scalar_select %p156, %s157, %s158
      %p162 = pneg %p156
      %p163 = scmp.eq.s32.totalorder %s16, 1
      %p164 = por %p162, %p163
      %p165 = scmp.ne.s32.totalorder %s157, %s160
      %p166 = scmp.eq.s32.totalorder %s16, 0
      %p167 = por %p165, %p166
      %p168 = scmp.ne.s32.totalorder %s157, %s160
      %p169 = scmp.eq.s32.totalorder %s21, 1
      %p170 = por %p168, %p169
      %p171 = scmp.ne.s32.totalorder %s160, %s161
      %p172 = scmp.eq.s32.totalorder %s21, 0
      %p173 = por %p171, %p172
      %p174 = scmp.ne.s32.totalorder %s160, %s161
      %p175 = scmp.eq.s32.totalorder %s22, 1
      %p176 = por %p174, %p175
      %p178 = scmp.ne.s32.totalorder %s161, %s177
      %p179 = scmp.eq.s32.totalorder %s22, 0
      %p180 = por %p178, %p179
      %p181 = scmp.le.s32.totalorder 1, %s16
      %p182 = scmp.lt.s32.totalorder %s16, 3
      %p183 = pnand %p181, %p182
      %p184 = pneg %p183
      // Predicated region
      $region9: #{tpu_custom_call.1} parent=5 // pred_check
        _
      $region10: #{tpu_custom_call.1} parent=5 // pred_check_branch
        %186 = sbr.rel (%p183) target = $region12
      $region11: #{tpu_custom_call.1} parent=5 // pred_region
        %s187 = ssub.s32 %s16, 1
        // Predicated region
        $region13: #{tpu_custom_call.1} parent=11 // pred_check
          %p188 = pneg %p63
        $region14: #{tpu_custom_call.1} parent=11 // pred_check_branch
          %190 = sbr.rel (%p188) target = $region16
        $region15: #{tpu_custom_call.1} parent=11 // pred_region
          _
        $region16: #{tpu_custom_call.1} parent=11 // pred_fallthru
          _
        // Predicated region
        $region17: #{tpu_custom_call.1} parent=11 // pred_check
          %p191 = pneg %p84
        $region18: #{tpu_custom_call.1} parent=11 // pred_check_branch
          %193 = sbr.rel (%p191) target = $region20
        $region19: #{tpu_custom_call.1} parent=11 // pred_region
          %195 = vsyncadd [#allocation3], 0
          %s196 = sshll.u32 %s2, 4
          %s197 = int_to_ptr.hbm [resolvable:$true] %s196
          %s198 = sshll.u32 [#allocation2], 4
          %s199 = int_to_ptr.vmem [resolvable:$true] %s198
          %204 = dma.hbm_to_vmem [thread:$0]  %s197, 3072, %s199, [#allocation3], 128, 128, 8
        $region20: #{tpu_custom_call.1} parent=11 // pred_fallthru
          _
        // Predicated region
        $region21: #{tpu_custom_call.1} parent=11 // pred_check
          %p205 = pneg %p105
        $region22: #{tpu_custom_call.1} parent=11 // pred_check_branch
          %207 = sbr.rel (%p205) target = $region24
        $region23: #{tpu_custom_call.1} parent=11 // pred_region
          _
        $region24: #{tpu_custom_call.1} parent=11 // pred_fallthru
          _
        // Predicated region
        $region25: #{tpu_custom_call.1} parent=11 // pred_check
          %p208 = pneg %p126
        $region26: #{tpu_custom_call.1} parent=11 // pred_check_branch
          %210 = sbr.rel (%p208) target = $region28
        $region27: #{tpu_custom_call.1} parent=11 // pred_region
          _
        $region28: #{tpu_custom_call.1} parent=11 // pred_fallthru
          _
        // Predicated region
        $region29: #{tpu_custom_call.1} parent=11 // pred_check
          %p211 = pneg %p147
        $region30: #{tpu_custom_call.1} parent=11 // pred_check_branch
          %213 = sbr.rel (%p211) target = $region32
        $region31: #{tpu_custom_call.1} parent=11 // pred_region
          _
        $region32: #{tpu_custom_call.1} parent=11 // pred_fallthru
          _
      $region12: #{tpu_custom_call.1} parent=5 // pred_fallthru
        _
      %p214 = scmp.lt.s32.totalorder %s16, 2
      // Predicated region
      $region33: #{tpu_custom_call.1} parent=5 // pred_check
        %p215 = pneg %p214
      $region34: #{tpu_custom_call.1} parent=5 // pred_check_branch
        %217 = sbr.rel (%p215) target = $region36
      $region35: #{tpu_custom_call.1} parent=5 // pred_region
        // Predicated region
        $region37: #{tpu_custom_call.1} parent=35 // pred_check
          %p218 = pneg %p36
        $region38: #{tpu_custom_call.1} parent=35 // pred_check_branch
          %220 = sbr.rel (%p218) target = $region40
        $region39: #{tpu_custom_call.1} parent=35 // pred_region
          %p221 = scmp.lt.s32.totalorder %s16, 1
          %s222 = scalar_select %p221, %s16, 1
          %s223 = smul.addr %s222, 8
          %s224 = smul.addr %s223, 8
          %s225 = scalar_lea.vmem %s0, %s224
        $region40: #{tpu_custom_call.1} parent=35 // pred_fallthru
          _
      $region36: #{tpu_custom_call.1} parent=5 // pred_fallthru
        _
      %p226 = scmp.le.s32.totalorder 1, %s16
      %p227 = scmp.lt.s32.totalorder %s16, 3
      %p228 = pnand %p226, %p227
      %p229 = pneg %p228
      // Predicated region
      $region41: #{tpu_custom_call.1} parent=5 // pred_check
        _
      $region42: #{tpu_custom_call.1} parent=5 // pred_check_branch
        %231 = sbr.rel (%p228) target = $region44
      $region43: #{tpu_custom_call.1} parent=5 // pred_region
        %s232 = ssub.s32 %s16, 1
        // Predicated region
        $region45: #{tpu_custom_call.1} parent=43 // pred_check
          %p233 = pneg %p84
        $region46: #{tpu_custom_call.1} parent=43 // pred_check_branch
          %235 = sbr.rel (%p233) target = $region48
        $region47: #{tpu_custom_call.1} parent=43 // pred_region
          %237 = dma.done [#allocation3], 3072
        $region48: #{tpu_custom_call.1} parent=43 // pred_fallthru
          _
        %p238 = scmp.lt.s32.totalorder %s21, 1
        %s239 = scalar_select %p238, %s21, 1
        %s240 = smul.addr %s239, 8
        %s241 = smul.addr %s240, 8
        %s242 = scalar_lea.vmem %s0, %s241
        %p243 = pneg %p42
        %p244 = pneg %p39
        %p245 = pneg %p63
        %p246 = pneg %p60
        %p247 = pneg %p84
        %p248 = pneg %p81
        %p249 = pneg %p105
        %p250 = pneg %p102
        %p251 = pneg %p126
        %p252 = pneg %p123
        %p253 = pneg %p147
        %p254 = pneg %p144
        %p255 = pneg %p173
        %p256 = pneg %p170
        %s257 = sand.u32 %s160, 1
        %s258 = scalar_lea.sflag [#allocation4], %s257
        %s259 = sand.u32 %s160, 1
        %s260 = smul.addr %s259, 64
        %s261 = scalar_lea.vmem [#allocation5], %s260
        %p262 = scmp.lt.s32.totalorder %s21, 1
        %s263 = scalar_select %p262, %s21, 1
        %s264 = smul.addr %s263, 8
        %s265 = smul.addr %s264, 8
        %s266 = scalar_lea.vmem %s0, %s265
        %v267 = vld [vmem:[%s266] sm:$0xff]
        %v268 = vld [vmem:[%s266 + $0x8] sm:$0xff]
        %v269 = vld [vmem:[%s266 + $0x10] sm:$0xff]
        %v270 = vld [vmem:[%s266 + $0x18] sm:$0xff]
        %v271 = vld [vmem:[%s266 + $0x20] sm:$0xff]
        %v272 = vld [vmem:[%s266 + $0x28] sm:$0xff]
        %v273 = vld [vmem:[%s266 + $0x30] sm:$0xff]
        %v274 = vld [vmem:[%s266 + $0x38] sm:$0xff]
        %v275 = vlaneseq
        %v276 = vand.u32 %v275, 127
        %v277 = vcvt.s32.f32 %v276
        %v278 = vadd.f32 %v277, 1.0
        %v279 = vmul.f32 %v278, 32.0
        %v280 = vrcp.pop %v279
        %v281 = vmul.f32 %v279, %v280
        %v282 = vsub.f32 1.0, %v281
        %v283 = vmul.f32 %v280, %v282
        %v284 = vadd.f32 %v280, %v283
        %vm285 = vweird.f32 %v279
        %vm286 = vweird.f32 %v280
        %vm287 = vmor %vm285, %vm286
        %v288 = vsel %vm287, %v280, %v284
        %v289 = vand.u32 2147483647, %v279
        %vm290 = vcmp.eq.f32.partialorder %v289, 8.507059e+37
        %v291 = vand.u32 %v279, 2147483648
        %v292 = vor.u32 1.1754944e-38, %v291
        %v293 = vsel %vm290, %v292, %v288
        %v294 = vmul.f32 1.0, %v293
        %v295 = vld [vmem:[%s4] sm:$0xff]
        %v296 = vld [vmem:[%s4 + $0x8] sm:$0xff]
        %v297 = vld [vmem:[%s4 + $0x10] sm:$0xff]
        %v298 = vld [vmem:[%s4 + $0x18] sm:$0xff]
        %v299 = vld [vmem:[%s1] sm:$0xff]
        %v300 = vld [vmem:[%s1 + $0x8] sm:$0xff]
        %v301 = vld [vmem:[%s1 + $0x10] sm:$0xff]
        %v302 = vld [vmem:[%s1 + $0x18] sm:$0xff]
        %304 = vset.pattern.permute.xlu0 0
        %305 = vperm.xlu0 %304, %v295
        %v306 = vpop.permute.xlu0 %305
        %309 = vset.pattern.permute.xlu0 0
        %310 = vperm.xlu0 %309, %v296
        %v311 = vpop.permute.xlu0 %310
        %314 = vset.pattern.permute.xlu0 0
        %315 = vperm.xlu0 %314, %v297
        %v316 = vpop.permute.xlu0 %315
        %319 = vset.pattern.permute.xlu0 0
        %320 = vperm.xlu0 %319, %v298
        %v321 = vpop.permute.xlu0 %320
        %vm323 = vcmask 523264
        %v325 = vsel %vm323, %v299, 0
        %v328 = vsel %vm323, %v300, 0
        %v331 = vsel %vm323, %v301, 0
        %v334 = vsel %vm323, %v302, 0
        %336 = vmatpush.msra.mxu0 0.0
        %337 = vmatpush.msra.mxu0 0.0
        %338 = vmatpush.msra.mxu0 0.0
        %339 = vmatpush.msra.mxu0 0.0
        %340 = vmatpush.msra.mxu0 0.0
        %341 = vmatpush.msra.mxu0 0.0
        %342 = vmatpush.msra.mxu0 0.0
        %343 = vmatpush.msra.mxu0 0.0
        %344 = vmatpush.msra.mxu0 %v274
        %345 = vmatpush.msra.mxu0 %v273
        %346 = vmatpush.msra.mxu0 %v272
        %347 = vmatpush.msra.mxu0 %v271
        %348 = vmatpush.msra.mxu0 %v270
        %349 = vmatpush.msra.mxu0 %v269
        %350 = vmatpush.msra.mxu0 %v268
        %351 = vmatpush.msra.mxu0 %v267
        %352 = vmatmul.f32.gmra.mxu0 %v325
        %v353 = vpop.f32.mrf.mxu0
        %v354 = vadd.f32 %v306, %v353
        %355 = vmatmul.f32.gmra.mxu0 %v328
        %v356 = vpop.f32.mrf.mxu0
        %v357 = vadd.f32 %v311, %v356
        %358 = vmatmul.f32.gmra.mxu0 %v331
        %v359 = vpop.f32.mrf.mxu0
        %v360 = vadd.f32 %v316, %v359
        %361 = vmatmul.f32.gmra.mxu0 %v334
        %v362 = vpop.f32.mrf.mxu0
        %v363 = vadd.f32 %v321, %v362
        %364 = vdwg.mxu0
        %v365 = vmax.f32 %v354, 0.0
        %v366 = vmax.f32 %v357, 0.0
        %v367 = vmax.f32 %v360, 0.0
        %v368 = vmax.f32 %v363, 0.0
        %v369 = vmin.f32 %v354, 0.0
        %v370 = vmin.f32 %v357, 0.0
        %v371 = vmin.f32 %v360, 0.0
        %v372 = vmin.f32 %v363, 0.0
        %373 = vset.pattern.permute.xlu0 1
        %374 = vperm.xlu0 %373, %v295
        %v375 = vpop.permute.xlu0 %374
        %377 = vset.pattern.permute.xlu0 1
        %378 = vperm.xlu0 %377, %v296
        %v379 = vpop.permute.xlu0 %378
        %381 = vset.pattern.permute.xlu0 1
        %382 = vperm.xlu0 %381, %v297
        %v383 = vpop.permute.xlu0 %382
        %385 = vset.pattern.permute.xlu0 1
        %386 = vperm.xlu0 %385, %v298
        %v387 = vpop.permute.xlu0 %386
        %v389 = vmul.f32 %v375, %v369
        %v390 = vmul.f32 %v379, %v370
        %v391 = vmul.f32 %v383, %v371
        %v392 = vmul.f32 %v387, %v372
        %v393 = vadd.f32 %v365, %v389
        %v394 = vadd.f32 %v366, %v390
        %v395 = vadd.f32 %v367, %v391
        %v396 = vadd.f32 %v368, %v392
        %v397 = vadd.f32 %v393, %v394
        %v398 = vadd.f32 %v397, %v395
        %v399 = vadd.f32 %v398, %v396
        %v400 = vrot.slane %v399, 4
        %v401 = vadd.f32 %v399, %v400
        %v402 = vrot.slane %v401, 2
        %v403 = vadd.f32 %v401, %v402
        %v404 = vrot.slane %v403, 1
        %v405 = vadd.f32 %v403, %v404
        %406 = vrot.lane.b32.xlu0 %v405, 1
        %v407 = vpop.permute.xlu0 %406
        %vm408 = vcmp.ge.s32.totalorder %v276, 1
        %v409 = vsel %vm408, 1, 0
        %v410 = vcvt.s32.f32 %v409
        %v411 = vmul.f32 %v407, %v410
        %v412 = vadd.f32 %v405, %v411
        %413 = vrot.lane.b32.xlu0 %v412, 2
        %v414 = vpop.permute.xlu0 %413
        %vm415 = vcmp.ge.s32.totalorder %v276, 2
        %v416 = vsel %vm415, 1, 0
        %v417 = vcvt.s32.f32 %v416
        %v418 = vmul.f32 %v414, %v417
        %v419 = vadd.f32 %v412, %v418
        %420 = vrot.lane.b32.xlu0 %v419, 4
        %v421 = vpop.permute.xlu0 %420
        %vm422 = vcmp.ge.s32.totalorder %v276, 4
        %v423 = vsel %vm422, 1, 0
        %v424 = vcvt.s32.f32 %v423
        %v425 = vmul.f32 %v421, %v424
        %v426 = vadd.f32 %v419, %v425
        %427 = vrot.lane.b32.xlu0 %v426, 8
        %v428 = vpop.permute.xlu0 %427
        %vm429 = vcmp.ge.s32.totalorder %v276, 8
        %v430 = vsel %vm429, 1, 0
        %v431 = vcvt.s32.f32 %v430
        %v432 = vmul.f32 %v428, %v431
        %v433 = vadd.f32 %v426, %v432
        %434 = vrot.lane.b32.xlu0 %v433, 16
        %v435 = vpop.permute.xlu0 %434
        %vm436 = vcmp.ge.s32.totalorder %v276, 16
        %v437 = vsel %vm436, 1, 0
        %v438 = vcvt.s32.f32 %v437
        %v439 = vmul.f32 %v435, %v438
        %v440 = vadd.f32 %v433, %v439
        %441 = vrot.lane.b32.xlu0 %v440, 32
        %v442 = vpop.permute.xlu0 %441
        %vm443 = vcmp.ge.s32.totalorder %v276, 32
        %v444 = vsel %vm443, 1, 0
        %v445 = vcvt.s32.f32 %v444
        %v446 = vmul.f32 %v442, %v445
        %v447 = vadd.f32 %v440, %v446
        %448 = vrot.lane.b32.xlu0 %v447, 64
        %v449 = vpop.permute.xlu0 %448
        %vm450 = vcmp.ge.s32.totalorder %v276, 64
        %v451 = vsel %vm450, 1, 0
        %v452 = vcvt.s32.f32 %v451
        %v453 = vmul.f32 %v449, %v452
        %v454 = vadd.f32 %v447, %v453
        %v455 = vmul.f32 %v393, %v393
        %v456 = vmul.f32 %v394, %v394
        %v457 = vmul.f32 %v395, %v395
        %v458 = vmul.f32 %v396, %v396
        %v459 = vadd.f32 %v455, %v456
        %v460 = vadd.f32 %v459, %v457
        %v461 = vadd.f32 %v460, %v458
        %v462 = vrot.slane %v461, 4
        %v463 = vadd.f32 %v461, %v462
        %v464 = vrot.slane %v463, 2
        %v465 = vadd.f32 %v463, %v464
        %v466 = vrot.slane %v465, 1
        %v467 = vadd.f32 %v465, %v466
        %468 = vrot.lane.b32.xlu0 %v467, 1
        %v469 = vpop.permute.xlu0 %468
        %v470 = vmul.f32 %v469, %v410
        %v471 = vadd.f32 %v467, %v470
        %472 = vrot.lane.b32.xlu0 %v471, 2
        %v473 = vpop.permute.xlu0 %472
        %v474 = vmul.f32 %v473, %v417
        %v475 = vadd.f32 %v471, %v474
        %476 = vrot.lane.b32.xlu0 %v475, 4
        %v477 = vpop.permute.xlu0 %476
        %v478 = vmul.f32 %v477, %v424
        %v479 = vadd.f32 %v475, %v478
        %480 = vrot.lane.b32.xlu0 %v479, 8
        %v481 = vpop.permute.xlu0 %480
        %v482 = vmul.f32 %v481, %v431
        %v483 = vadd.f32 %v479, %v482
        %484 = vrot.lane.b32.xlu0 %v483, 16
        %v485 = vpop.permute.xlu0 %484
        %v486 = vmul.f32 %v485, %v438
        %v487 = vadd.f32 %v483, %v486
        %488 = vrot.lane.b32.xlu0 %v487, 32
        %v489 = vpop.permute.xlu0 %488
        %v490 = vmul.f32 %v489, %v445
        %v491 = vadd.f32 %v487, %v490
        %492 = vrot.lane.b32.xlu0 %v491, 64
        %v493 = vpop.permute.xlu0 %492
        %v494 = vmul.f32 %v493, %v452
        %v495 = vadd.f32 %v491, %v494
        %v496 = vmul.f32 %v454, %v294
        %v497 = vmul.f32 %v495, %v294
        %v498 = vmul.f32 %v496, %v496
        %v499 = vsub.f32 %v497, %v498
        %v500 = vadd.f32 %v499, 1e-05
        %v501 = vrsqrt.pop %v500
        %v502 = vmul.f32 %v501, %v500
        %v503 = vmul.f32 %v502, %v501
        %v504 = vmul.f32 0.5, %v503
        %v505 = vsub.f32 1.5, %v504
        %v506 = vmul.f32 %v501, %v505
        %vm507 = vweird.f32 %v500
        %vm508 = vweird.f32 %v501
        %vm509 = vmor %vm507, %vm508
        %v510 = vsel %vm509, %v501, %v506
        %v511 = vperm.slane %v496, 0
        %v512 = vsub.f32 %v393, %v511
        %v513 = vsub.f32 %v394, %v511
        %v514 = vsub.f32 %v395, %v511
        %v515 = vsub.f32 %v396, %v511
        %v516 = vperm.slane %v510, 0
        %v517 = vmul.f32 %v512, %v516
        %v518 = vmul.f32 %v513, %v516
        %v519 = vmul.f32 %v514, %v516
        %v520 = vmul.f32 %v515, %v516
        %521 = vset.pattern.permute.xlu0 2
        %522 = vperm.xlu0 %521, %v295
        %v523 = vpop.permute.xlu0 %522
        %525 = vset.pattern.permute.xlu0 2
        %526 = vperm.xlu0 %525, %v296
        %v527 = vpop.permute.xlu0 %526
        %529 = vset.pattern.permute.xlu0 2
        %530 = vperm.xlu0 %529, %v297
        %v531 = vpop.permute.xlu0 %530
        %533 = vset.pattern.permute.xlu0 2
        %534 = vperm.xlu0 %533, %v298
        %v535 = vpop.permute.xlu0 %534
        %v537 = vmul.f32 %v517, %v523
        %v538 = vmul.f32 %v518, %v527
        %v539 = vmul.f32 %v519, %v531
        %v540 = vmul.f32 %v520, %v535
        %541 = vset.pattern.permute.xlu0 3
        %542 = vperm.xlu0 %541, %v295
        %v543 = vpop.permute.xlu0 %542
        %545 = vset.pattern.permute.xlu0 3
        %546 = vperm.xlu0 %545, %v296
        %v547 = vpop.permute.xlu0 %546
        %549 = vset.pattern.permute.xlu0 3
        %550 = vperm.xlu0 %549, %v297
        %v551 = vpop.permute.xlu0 %550
        %553 = vset.pattern.permute.xlu0 3
        %554 = vperm.xlu0 %553, %v298
        %v555 = vpop.permute.xlu0 %554
        %v557 = vadd.f32 %v537, %v543
        %v558 = vadd.f32 %v538, %v547
        %v559 = vadd.f32 %v539, %v551
        %v560 = vadd.f32 %v540, %v555
        %s561 = scalar_lea.vmem [#allocation2], 64
        %v562 = vld [vmem:[%s561] sm:$0xff]
        %v563 = vld [vmem:[%s561 + $0x8] sm:$0xff]
        %v564 = vld [vmem:[%s561 + $0x10] sm:$0xff]
        %v565 = vld [vmem:[%s561 + $0x18] sm:$0xff]
        %vm566 = vcmask 261120
        %v568 = vsel %vm566, %v562, 0
        %v571 = vsel %vm566, %v563, 0
        %v574 = vsel %vm566, %v564, 0
        %v577 = vsel %vm566, %v565, 0
        %579 = vmatpush.msra.mxu0 0.0
        %580 = vmatpush.msra.mxu0 0.0
        %581 = vmatpush.msra.mxu0 0.0
        %582 = vmatpush.msra.mxu0 0.0
        %583 = vmatpush.msra.mxu0 0.0
        %584 = vmatpush.msra.mxu0 0.0
        %585 = vmatpush.msra.mxu0 0.0
        %586 = vmatpush.msra.mxu0 0.0
        %587 = vmatpush.msra.mxu0 0.0
        %588 = vmatpush.msra.mxu0 0.0
        %589 = vmatpush.msra.mxu0 0.0
        %590 = vmatpush.msra.mxu0 0.0
        %591 = vmatpush.msra.mxu0 %v560
        %592 = vmatpush.msra.mxu0 %v559
        %593 = vmatpush.msra.mxu0 %v558
        %594 = vmatpush.msra.mxu0 %v557
        %595 = vmatmul.f32.gmra.mxu0 %v568
        %v596 = vpop.f32.mrf.mxu0
        %v597 = vadd.f32 0.0, %v596
        %598 = vmatmul.f32.gmra.mxu0 %v571
        %v599 = vpop.f32.mrf.mxu0
        %v600 = vadd.f32 0.0, %v599
        %601 = vmatmul.f32.gmra.mxu0 %v574
        %v602 = vpop.f32.mrf.mxu0
        %v603 = vadd.f32 0.0, %v602
        %604 = vmatmul.f32.gmra.mxu0 %v577
        %v605 = vpop.f32.mrf.mxu0
        %v606 = vadd.f32 0.0, %v605
        %607 = vdwg.mxu0
        %608 = vset.pattern.permute.xlu0 4
        %609 = vperm.xlu0 %608, %v295
        %v610 = vpop.permute.xlu0 %609
        %612 = vset.pattern.permute.xlu0 4
        %613 = vperm.xlu0 %612, %v296
        %v614 = vpop.permute.xlu0 %613
        %616 = vset.pattern.permute.xlu0 4
        %617 = vperm.xlu0 %616, %v297
        %v618 = vpop.permute.xlu0 %617
        %620 = vset.pattern.permute.xlu0 4
        %621 = vperm.xlu0 %620, %v298
        %v622 = vpop.permute.xlu0 %621
        %v624 = vadd.f32 %v610, %v597
        %v625 = vadd.f32 %v614, %v600
        %v626 = vadd.f32 %v618, %v603
        %v627 = vadd.f32 %v622, %v606
        %s628 = scalar_lea.vmem [#allocation2], 32
        %v629 = vld [vmem:[%s628] sm:$0xff]
        %v630 = vld [vmem:[%s628 + $0x8] sm:$0xff]
        %v631 = vld [vmem:[%s628 + $0x10] sm:$0xff]
        %v632 = vld [vmem:[%s628 + $0x18] sm:$0xff]
        %633 = vrot.lane.b32.xlu0 %v557, 2
        %v634 = vpop.permute.xlu0 %633
        %635 = vrot.lane.b32.xlu0 %v558, 2
        %v636 = vpop.permute.xlu0 %635
        %637 = vrot.lane.b32.xlu0 %v559, 2
        %v638 = vpop.permute.xlu0 %637
        %639 = vrot.lane.b32.xlu0 %v560, 2
        %v640 = vpop.permute.xlu0 %639
        %v641 = vmul.f32 %v634, %v417
        %v642 = vmul.f32 %v636, %v417
        %v643 = vmul.f32 %v638, %v417
        %v644 = vmul.f32 %v640, %v417
        %v646 = vsel %vm566, %v629, 0
        %v649 = vsel %vm566, %v630, 0
        %v652 = vsel %vm566, %v631, 0
        %v655 = vsel %vm566, %v632, 0
        %657 = vmatpush.msra.mxu0 0.0
        %658 = vmatpush.msra.mxu0 0.0
        %659 = vmatpush.msra.mxu0 0.0
        %660 = vmatpush.msra.mxu0 0.0
        %661 = vmatpush.msra.mxu0 0.0
        %662 = vmatpush.msra.mxu0 0.0
        %663 = vmatpush.msra.mxu0 0.0
        %664 = vmatpush.msra.mxu0 0.0
        %665 = vmatpush.msra.mxu0 0.0
        %666 = vmatpush.msra.mxu0 0.0
        %667 = vmatpush.msra.mxu0 0.0
        %668 = vmatpush.msra.mxu0 0.0
        %669 = vmatpush.msra.mxu0 %v644
        %670 = vmatpush.msra.mxu0 %v643
        %671 = vmatpush.msra.mxu0 %v642
        %672 = vmatpush.msra.mxu0 %v641
        %673 = vmatmul.f32.gmra.mxu0 %v646
        %v674 = vpop.f32.mrf.mxu0
        %v675 = vadd.f32 0.0, %v674
        %676 = vmatmul.f32.gmra.mxu0 %v649
        %v677 = vpop.f32.mrf.mxu0
        %v678 = vadd.f32 0.0, %v677
        %679 = vmatmul.f32.gmra.mxu0 %v652
        %v680 = vpop.f32.mrf.mxu0
        %v681 = vadd.f32 0.0, %v680
        %682 = vmatmul.f32.gmra.mxu0 %v655
        %v683 = vpop.f32.mrf.mxu0
        %v684 = vadd.f32 0.0, %v683
        %685 = vdwg.mxu0
        %v686 = vadd.f32 %v624, %v675
        %v687 = vadd.f32 %v625, %v678
        %v688 = vadd.f32 %v626, %v681
        %v689 = vadd.f32 %v627, %v684
        %v690 = vld [vmem:[#allocation2] sm:$0xff]
        %v691 = vld [vmem:[#allocation2 + $0x8] sm:$0xff]
        %v692 = vld [vmem:[#allocation2 + $0x10] sm:$0xff]
        %v693 = vld [vmem:[#allocation2 + $0x18] sm:$0xff]
        %694 = vrot.lane.b32.xlu0 %v557, 4
        %v695 = vpop.permute.xlu0 %694
        %696 = vrot.lane.b32.xlu0 %v558, 4
        %v697 = vpop.permute.xlu0 %696
        %698 = vrot.lane.b32.xlu0 %v559, 4
        %v699 = vpop.permute.xlu0 %698
        %700 = vrot.lane.b32.xlu0 %v560, 4
        %v701 = vpop.permute.xlu0 %700
        %v702 = vmul.f32 %v695, %v424
        %v703 = vmul.f32 %v697, %v424
        %v704 = vmul.f32 %v699, %v424
        %v705 = vmul.f32 %v701, %v424
        %v707 = vsel %vm566, %v690, 0
        %v710 = vsel %vm566, %v691, 0
        %v713 = vsel %vm566, %v692, 0
        %v716 = vsel %vm566, %v693, 0
        %718 = vmatpush.msra.mxu0 0.0
        %719 = vmatpush.msra.mxu0 0.0
        %720 = vmatpush.msra.mxu0 0.0
        %721 = vmatpush.msra.mxu0 0.0
        %722 = vmatpush.msra.mxu0 0.0
        %723 = vmatpush.msra.mxu0 0.0
        %724 = vmatpush.msra.mxu0 0.0
        %725 = vmatpush.msra.mxu0 0.0
        %726 = vmatpush.msra.mxu0 0.0
        %727 = vmatpush.msra.mxu0 0.0
        %728 = vmatpush.msra.mxu0 0.0
        %729 = vmatpush.msra.mxu0 0.0
        %730 = vmatpush.msra.mxu0 %v705
        %731 = vmatpush.msra.mxu0 %v704
        %732 = vmatpush.msra.mxu0 %v703
        %733 = vmatpush.msra.mxu0 %v702
        %734 = vmatmul.f32.gmra.mxu0 %v707
        %v735 = vpop.f32.mrf.mxu0
        %v736 = vadd.f32 0.0, %v735
        %737 = vmatmul.f32.gmra.mxu0 %v710
        %v738 = vpop.f32.mrf.mxu0
        %v739 = vadd.f32 0.0, %v738
        %740 = vmatmul.f32.gmra.mxu0 %v713
        %v741 = vpop.f32.mrf.mxu0
        %v742 = vadd.f32 0.0, %v741
        %743 = vmatmul.f32.gmra.mxu0 %v716
        %v744 = vpop.f32.mrf.mxu0
        %v745 = vadd.f32 0.0, %v744
        %746 = vdwg.mxu0
        %v747 = vadd.f32 %v686, %v736
        %v748 = vadd.f32 %v687, %v739
        %v749 = vadd.f32 %v688, %v742
        %v750 = vadd.f32 %v689, %v745
        %751 = vset.pattern.permute.xlu0 5
        %752 = vperm.xlu0 %751, %v295
        %v753 = vpop.permute.xlu0 %752
        %755 = vset.pattern.permute.xlu0 5
        %756 = vperm.xlu0 %755, %v296
        %v757 = vpop.permute.xlu0 %756
        %759 = vset.pattern.permute.xlu0 5
        %760 = vperm.xlu0 %759, %v297
        %v761 = vpop.permute.xlu0 %760
        %763 = vset.pattern.permute.xlu0 5
        %764 = vperm.xlu0 %763, %v298
        %v765 = vpop.permute.xlu0 %764
        %v767 = vmul.f32 %v753, %v369
        %v768 = vmul.f32 %v757, %v370
        %v769 = vmul.f32 %v761, %v371
        %v770 = vmul.f32 %v765, %v372
        %v771 = vadd.f32 %v365, %v767
        %v772 = vadd.f32 %v366, %v768
        %v773 = vadd.f32 %v367, %v769
        %v774 = vadd.f32 %v368, %v770
        %v775 = vadd.f32 %v771, %v772
        %v776 = vadd.f32 %v775, %v773
        %v777 = vadd.f32 %v776, %v774
        %v778 = vrot.slane %v777, 4
        %v779 = vadd.f32 %v777, %v778
        %v780 = vrot.slane %v779, 2
        %v781 = vadd.f32 %v779, %v780
        %v782 = vrot.slane %v781, 1
        %v783 = vadd.f32 %v781, %v782
        %784 = vrot.lane.b32.xlu0 %v783, 1
        %v785 = vpop.permute.xlu0 %784
        %v786 = vmul.f32 %v785, %v410
        %v787 = vadd.f32 %v783, %v786
        %788 = vrot.lane.b32.xlu0 %v787, 2
        %v789 = vpop.permute.xlu0 %788
        %v790 = vmul.f32 %v789, %v417
        %v791 = vadd.f32 %v787, %v790
        %792 = vrot.lane.b32.xlu0 %v791, 4
        %v793 = vpop.permute.xlu0 %792
        %v794 = vmul.f32 %v793, %v424
        %v795 = vadd.f32 %v791, %v794
        %796 = vrot.lane.b32.xlu0 %v795, 8
        %v797 = vpop.permute.xlu0 %796
        %v798 = vmul.f32 %v797, %v431
        %v799 = vadd.f32 %v795, %v798
        %800 = vrot.lane.b32.xlu0 %v799, 16
        %v801 = vpop.permute.xlu0 %800
        %v802 = vmul.f32 %v801, %v438
        %v803 = vadd.f32 %v799, %v802
        %804 = vrot.lane.b32.xlu0 %v803, 32
        %v805 = vpop.permute.xlu0 %804
        %v806 = vmul.f32 %v805, %v445
        %v807 = vadd.f32 %v803, %v806
        %808 = vrot.lane.b32.xlu0 %v807, 64
        %v809 = vpop.permute.xlu0 %808
        %v810 = vmul.f32 %v809, %v452
        %v811 = vadd.f32 %v807, %v810
        %v812 = vmul.f32 %v771, %v771
        %v813 = vmul.f32 %v772, %v772
        %v814 = vmul.f32 %v773, %v773
        %v815 = vmul.f32 %v774, %v774
        %v816 = vadd.f32 %v812, %v813
        %v817 = vadd.f32 %v816, %v814
        %v818 = vadd.f32 %v817, %v815
        %v819 = vrot.slane %v818, 4
        %v820 = vadd.f32 %v818, %v819
        %v821 = vrot.slane %v820, 2
        %v822 = vadd.f32 %v820, %v821
        %v823 = vrot.slane %v822, 1
        %v824 = vadd.f32 %v822, %v823
        %825 = vrot.lane.b32.xlu0 %v824, 1
        %v826 = vpop.permute.xlu0 %825
        %v827 = vmul.f32 %v826, %v410
        %v828 = vadd.f32 %v824, %v827
        %829 = vrot.lane.b32.xlu0 %v828, 2
        %v830 = vpop.permute.xlu0 %829
        %v831 = vmul.f32 %v830, %v417
        %v832 = vadd.f32 %v828, %v831
        %833 = vrot.lane.b32.xlu0 %v832, 4
        %v834 = vpop.permute.xlu0 %833
        %v835 = vmul.f32 %v834, %v424
        %v836 = vadd.f32 %v832, %v835
        %837 = vrot.lane.b32.xlu0 %v836, 8
        %v838 = vpop.permute.xlu0 %837
        %v839 = vmul.f32 %v838, %v431
        %v840 = vadd.f32 %v836, %v839
        %841 = vrot.lane.b32.xlu0 %v840, 16
        %v842 = vpop.permute.xlu0 %841
        %v843 = vmul.f32 %v842, %v438
        %v844 = vadd.f32 %v840, %v843
        %845 = vrot.lane.b32.xlu0 %v844, 32
        %v846 = vpop.permute.xlu0 %845
        %v847 = vmul.f32 %v846, %v445
        %v848 = vadd.f32 %v844, %v847
        %849 = vrot.lane.b32.xlu0 %v848, 64
        %v850 = vpop.permute.xlu0 %849
        %v851 = vmul.f32 %v850, %v452
        %v852 = vadd.f32 %v848, %v851
        %v853 = vmul.f32 %v811, %v294
        %v854 = vmul.f32 %v852, %v294
        %v855 = vmul.f32 %v853, %v853
        %v856 = vsub.f32 %v854, %v855
        %v857 = vadd.f32 %v856, 1e-05
        %v858 = vrsqrt.pop %v857
        %v859 = vmul.f32 %v858, %v857
        %v860 = vmul.f32 %v859, %v858
        %v861 = vmul.f32 0.5, %v860
        %v862 = vsub.f32 1.5, %v861
        %v863 = vmul.f32 %v858, %v862
        %vm864 = vweird.f32 %v857
        %vm865 = vweird.f32 %v858
        %vm866 = vmor %vm864, %vm865
        %v867 = vsel %vm866, %v858, %v863
        %v868 = vperm.slane %v853, 0
        %v869 = vsub.f32 %v771, %v868
        %v870 = vsub.f32 %v772, %v868
        %v871 = vsub.f32 %v773, %v868
        %v872 = vsub.f32 %v774, %v868
        %v873 = vperm.slane %v867, 0
        %v874 = vmul.f32 %v869, %v873
        %v875 = vmul.f32 %v870, %v873
        %v876 = vmul.f32 %v871, %v873
        %v877 = vmul.f32 %v872, %v873
        %878 = vset.pattern.permute.xlu0 6
        %879 = vperm.xlu0 %878, %v295
        %v880 = vpop.permute.xlu0 %879
        %882 = vset.pattern.permute.xlu0 6
        %883 = vperm.xlu0 %882, %v296
        %v884 = vpop.permute.xlu0 %883
        %886 = vset.pattern.permute.xlu0 6
        %887 = vperm.xlu0 %886, %v297
        %v888 = vpop.permute.xlu0 %887
        %890 = vset.pattern.permute.xlu0 6
        %891 = vperm.xlu0 %890, %v298
        %v892 = vpop.permute.xlu0 %891
        %v894 = vmul.f32 %v874, %v880
        %v895 = vmul.f32 %v875, %v884
        %v896 = vmul.f32 %v876, %v888
        %v897 = vmul.f32 %v877, %v892
        %898 = vset.pattern.permute.xlu0 7
        %899 = vperm.xlu0 %898, %v295
        %v900 = vpop.permute.xlu0 %899
        %902 = vset.pattern.permute.xlu0 7
        %903 = vperm.xlu0 %902, %v296
        %v904 = vpop.permute.xlu0 %903
        %906 = vset.pattern.permute.xlu0 7
        %907 = vperm.xlu0 %906, %v297
        %v908 = vpop.permute.xlu0 %907
        %910 = vset.pattern.permute.xlu0 7
        %911 = vperm.xlu0 %910, %v298
        %v912 = vpop.permute.xlu0 %911
        %v914 = vadd.f32 %v894, %v900
        %v915 = vadd.f32 %v895, %v904
        %v916 = vadd.f32 %v896, %v908
        %v917 = vadd.f32 %v897, %v912
        %s918 = scalar_lea.vmem [#allocation2], 160
        %v919 = vld [vmem:[%s918] sm:$0xff]
        %v920 = vld [vmem:[%s918 + $0x8] sm:$0xff]
        %v921 = vld [vmem:[%s918 + $0x10] sm:$0xff]
        %v922 = vld [vmem:[%s918 + $0x18] sm:$0xff]
        %v924 = vsel %vm566, %v919, 0
        %v927 = vsel %vm566, %v920, 0
        %v930 = vsel %vm566, %v921, 0
        %v933 = vsel %vm566, %v922, 0
        %935 = vmatpush.msra.mxu0 0.0
        %936 = vmatpush.msra.mxu0 0.0
        %937 = vmatpush.msra.mxu0 0.0
        %938 = vmatpush.msra.mxu0 0.0
        %939 = vmatpush.msra.mxu0 0.0
        %940 = vmatpush.msra.mxu0 0.0
        %941 = vmatpush.msra.mxu0 0.0
        %942 = vmatpush.msra.mxu0 0.0
        %943 = vmatpush.msra.mxu0 0.0
        %944 = vmatpush.msra.mxu0 0.0
        %945 = vmatpush.msra.mxu0 0.0
        %946 = vmatpush.msra.mxu0 0.0
        %947 = vmatpush.msra.mxu0 %v917
        %948 = vmatpush.msra.mxu0 %v916
        %949 = vmatpush.msra.mxu0 %v915
        %950 = vmatpush.msra.mxu0 %v914
        %951 = vmatmul.f32.gmra.mxu0 %v924
        %v952 = vpop.f32.mrf.mxu0
        %v953 = vadd.f32 0.0, %v952
        %954 = vmatmul.f32.gmra.mxu0 %v927
        %v955 = vpop.f32.mrf.mxu0
        %v956 = vadd.f32 0.0, %v955
        %957 = vmatmul.f32.gmra.mxu0 %v930
        %v958 = vpop.f32.mrf.mxu0
        %v959 = vadd.f32 0.0, %v958
        %960 = vmatmul.f32.gmra.mxu0 %v933
        %v961 = vpop.f32.mrf.mxu0
        %v962 = vadd.f32 0.0, %v961
        %963 = vdwg.mxu0
        %964 = vset.pattern.permute.xlu0 8
        %965 = vperm.xlu0 %964, %v295
        %v966 = vpop.permute.xlu0 %965
        %968 = vset.pattern.permute.xlu0 8
        %969 = vperm.xlu0 %968, %v296
        %v970 = vpop.permute.xlu0 %969
        %972 = vset.pattern.permute.xlu0 8
        %973 = vperm.xlu0 %972, %v297
        %v974 = vpop.permute.xlu0 %973
        %976 = vset.pattern.permute.xlu0 8
        %977 = vperm.xlu0 %976, %v298
        %v978 = vpop.permute.xlu0 %977
        %v980 = vadd.f32 %v966, %v953
        %v981 = vadd.f32 %v970, %v956
        %v982 = vadd.f32 %v974, %v959
        %v983 = vadd.f32 %v978, %v962
        %s984 = scalar_lea.vmem [#allocation2], 128
        %v985 = vld [vmem:[%s984] sm:$0xff]
        %v986 = vld [vmem:[%s984 + $0x8] sm:$0xff]
        %v987 = vld [vmem:[%s984 + $0x10] sm:$0xff]
        %v988 = vld [vmem:[%s984 + $0x18] sm:$0xff]
        %989 = vrot.lane.b32.xlu0 %v914, 2
        %v990 = vpop.permute.xlu0 %989
        %991 = vrot.lane.b32.xlu0 %v915, 2
        %v992 = vpop.permute.xlu0 %991
        %993 = vrot.lane.b32.xlu0 %v916, 2
        %v994 = vpop.permute.xlu0 %993
        %995 = vrot.lane.b32.xlu0 %v917, 2
        %v996 = vpop.permute.xlu0 %995
        %v997 = vmul.f32 %v990, %v417
        %v998 = vmul.f32 %v992, %v417
        %v999 = vmul.f32 %v994, %v417
        %v1000 = vmul.f32 %v996, %v417
        %v1002 = vsel %vm566, %v985, 0
        %v1005 = vsel %vm566, %v986, 0
        %v1008 = vsel %vm566, %v987, 0
        %v1011 = vsel %vm566, %v988, 0
        %1013 = vmatpush.msra.mxu0 0.0
        %1014 = vmatpush.msra.mxu0 0.0
        %1015 = vmatpush.msra.mxu0 0.0
        %1016 = vmatpush.msra.mxu0 0.0
        %1017 = vmatpush.msra.mxu0 0.0
        %1018 = vmatpush.msra.mxu0 0.0
        %1019 = vmatpush.msra.mxu0 0.0
        %1020 = vmatpush.msra.mxu0 0.0
        %1021 = vmatpush.msra.mxu0 0.0
        %1022 = vmatpush.msra.mxu0 0.0
        %1023 = vmatpush.msra.mxu0 0.0
        %1024 = vmatpush.msra.mxu0 0.0
        %1025 = vmatpush.msra.mxu0 %v1000
        %1026 = vmatpush.msra.mxu0 %v999
        %1027 = vmatpush.msra.mxu0 %v998
        %1028 = vmatpush.msra.mxu0 %v997
        %1029 = vmatmul.f32.gmra.mxu0 %v1002
        %v1030 = vpop.f32.mrf.mxu0
        %v1031 = vadd.f32 0.0, %v1030
        %1032 = vmatmul.f32.gmra.mxu0 %v1005
        %v1033 = vpop.f32.mrf.mxu0
        %v1034 = vadd.f32 0.0, %v1033
        %1035 = vmatmul.f32.gmra.mxu0 %v1008
        %v1036 = vpop.f32.mrf.mxu0
        %v1037 = vadd.f32 0.0, %v1036
        %1038 = vmatmul.f32.gmra.mxu0 %v1011
        %v1039 = vpop.f32.mrf.mxu0
        %v1040 = vadd.f32 0.0, %v1039
        %1041 = vdwg.mxu0
        %v1042 = vadd.f32 %v980, %v1031
        %v1043 = vadd.f32 %v981, %v1034
        %v1044 = vadd.f32 %v982, %v1037
        %v1045 = vadd.f32 %v983, %v1040
        %s1046 = scalar_lea.vmem [#allocation2], 96
        %v1047 = vld [vmem:[%s1046] sm:$0xff]
        %v1048 = vld [vmem:[%s1046 + $0x8] sm:$0xff]
        %v1049 = vld [vmem:[%s1046 + $0x10] sm:$0xff]
        %v1050 = vld [vmem:[%s1046 + $0x18] sm:$0xff]
        %1051 = vrot.lane.b32.xlu0 %v914, 4
        %v1052 = vpop.permute.xlu0 %1051
        %1053 = vrot.lane.b32.xlu0 %v915, 4
        %v1054 = vpop.permute.xlu0 %1053
        %1055 = vrot.lane.b32.xlu0 %v916, 4
        %v1056 = vpop.permute.xlu0 %1055
        %1057 = vrot.lane.b32.xlu0 %v917, 4
        %v1058 = vpop.permute.xlu0 %1057
        %v1059 = vmul.f32 %v1052, %v424
        %v1060 = vmul.f32 %v1054, %v424
        %v1061 = vmul.f32 %v1056, %v424
        %v1062 = vmul.f32 %v1058, %v424
        %v1064 = vsel %vm566, %v1047, 0
        %v1067 = vsel %vm566, %v1048, 0
        %v1070 = vsel %vm566, %v1049, 0
        %v1073 = vsel %vm566, %v1050, 0
        %1075 = vmatpush.msra.mxu0 0.0
        %1076 = vmatpush.msra.mxu0 0.0
        %1077 = vmatpush.msra.mxu0 0.0
        %1078 = vmatpush.msra.mxu0 0.0
        %1079 = vmatpush.msra.mxu0 0.0
        %1080 = vmatpush.msra.mxu0 0.0
        %1081 = vmatpush.msra.mxu0 0.0
        %1082 = vmatpush.msra.mxu0 0.0
        %1083 = vmatpush.msra.mxu0 0.0
        %1084 = vmatpush.msra.mxu0 0.0
        %1085 = vmatpush.msra.mxu0 0.0
        %1086 = vmatpush.msra.mxu0 0.0
        %1087 = vmatpush.msra.mxu0 %v1062
        %1088 = vmatpush.msra.mxu0 %v1061
        %1089 = vmatpush.msra.mxu0 %v1060
        %1090 = vmatpush.msra.mxu0 %v1059
        %1091 = vmatmul.f32.gmra.mxu0 %v1064
        %v1092 = vpop.f32.mrf.mxu0
        %v1093 = vadd.f32 0.0, %v1092
        %1094 = vmatmul.f32.gmra.mxu0 %v1067
        %v1095 = vpop.f32.mrf.mxu0
        %v1096 = vadd.f32 0.0, %v1095
        %1097 = vmatmul.f32.gmra.mxu0 %v1070
        %v1098 = vpop.f32.mrf.mxu0
        %v1099 = vadd.f32 0.0, %v1098
        %1100 = vmatmul.f32.gmra.mxu0 %v1073
        %v1101 = vpop.f32.mrf.mxu0
        %v1102 = vadd.f32 0.0, %v1101
        %1103 = vdwg.mxu0
        %v1104 = vadd.f32 %v1042, %v1093
        %v1105 = vadd.f32 %v1043, %v1096
        %v1106 = vadd.f32 %v1044, %v1099
        %v1107 = vadd.f32 %v1045, %v1102
        %v1108 = vsub.f32 0.0, %v1104
        %v1109 = vsub.f32 0.0, %v1105
        %v1110 = vsub.f32 0.0, %v1106
        %v1111 = vsub.f32 0.0, %v1107
        %v1112 = vmul.f32 %v1108, 1.442695
        %v1113 = vpow.pop %v1112
        %v1114 = vmul.f32 %v1109, 1.442695
        %v1115 = vpow.pop %v1114
        %v1116 = vmul.f32 %v1110, 1.442695
        %v1117 = vpow.pop %v1116
        %v1118 = vmul.f32 %v1111, 1.442695
        %v1119 = vpow.pop %v1118
        %v1120 = vadd.f32 %v1113, 1.0
        %v1121 = vadd.f32 %v1115, 1.0
        %v1122 = vadd.f32 %v1117, 1.0
        %v1123 = vadd.f32 %v1119, 1.0
        %v1124 = vrcp.pop %v1120
        %v1125 = vrcp.pop %v1121
        %v1126 = vrcp.pop %v1122
        %v1127 = vrcp.pop %v1123
        %v1128 = vmul.f32 %v747, %v1124
        %v1129 = vmul.f32 %v748, %v1125
        %v1130 = vmul.f32 %v749, %v1126
        %v1131 = vmul.f32 %v750, %v1127
        %v1132 = vmax.f32 %v1128, 0.0
        %v1133 = vmax.f32 %v1129, 0.0
        %v1134 = vmax.f32 %v1130, 0.0
        %v1135 = vmax.f32 %v1131, 0.0
        %v1136 = vmin.f32 %v1128, 0.0
        %v1137 = vmin.f32 %v1129, 0.0
        %v1138 = vmin.f32 %v1130, 0.0
        %v1139 = vmin.f32 %v1131, 0.0
        %1140 = vset.pattern.permute.xlu0 9
        %1141 = vperm.xlu0 %1140, %v295
        %v1142 = vpop.permute.xlu0 %1141
        %1144 = vset.pattern.permute.xlu0 9
        %1145 = vperm.xlu0 %1144, %v296
        %v1146 = vpop.permute.xlu0 %1145
        %1148 = vset.pattern.permute.xlu0 9
        %1149 = vperm.xlu0 %1148, %v297
        %v1150 = vpop.permute.xlu0 %1149
        %1152 = vset.pattern.permute.xlu0 9
        %1153 = vperm.xlu0 %1152, %v298
        %v1154 = vpop.permute.xlu0 %1153
        %v1156 = vmul.f32 %v1142, %v1136
        %v1157 = vmul.f32 %v1146, %v1137
        %v1158 = vmul.f32 %v1150, %v1138
        %v1159 = vmul.f32 %v1154, %v1139
        %v1160 = vadd.f32 %v1132, %v1156
        %v1161 = vadd.f32 %v1133, %v1157
        %v1162 = vadd.f32 %v1134, %v1158
        %v1163 = vadd.f32 %v1135, %v1159
        %v1164 = vadd.f32 %v1160, %v1161
        %v1165 = vadd.f32 %v1164, %v1162
        %v1166 = vadd.f32 %v1165, %v1163
        %v1167 = vrot.slane %v1166, 4
        %v1168 = vadd.f32 %v1166, %v1167
        %v1169 = vrot.slane %v1168, 2
        %v1170 = vadd.f32 %v1168, %v1169
        %v1171 = vrot.slane %v1170, 1
        %v1172 = vadd.f32 %v1170, %v1171
        %1173 = vrot.lane.b32.xlu0 %v1172, 1
        %v1174 = vpop.permute.xlu0 %1173
        %v1175 = vmul.f32 %v1174, %v410
        %v1176 = vadd.f32 %v1172, %v1175
        %1177 = vrot.lane.b32.xlu0 %v1176, 2
        %v1178 = vpop.permute.xlu0 %1177
        %v1179 = vmul.f32 %v1178, %v417
        %v1180 = vadd.f32 %v1176, %v1179
        %1181 = vrot.lane.b32.xlu0 %v1180, 4
        %v1182 = vpop.permute.xlu0 %1181
        %v1183 = vmul.f32 %v1182, %v424
        %v1184 = vadd.f32 %v1180, %v1183
        %1185 = vrot.lane.b32.xlu0 %v1184, 8
        %v1186 = vpop.permute.xlu0 %1185
        %v1187 = vmul.f32 %v1186, %v431
        %v1188 = vadd.f32 %v1184, %v1187
        %1189 = vrot.lane.b32.xlu0 %v1188, 16
        %v1190 = vpop.permute.xlu0 %1189
        %v1191 = vmul.f32 %v1190, %v438
        %v1192 = vadd.f32 %v1188, %v1191
        %1193 = vrot.lane.b32.xlu0 %v1192, 32
        %v1194 = vpop.permute.xlu0 %1193
        %v1195 = vmul.f32 %v1194, %v445
        %v1196 = vadd.f32 %v1192, %v1195
        %1197 = vrot.lane.b32.xlu0 %v1196, 64
        %v1198 = vpop.permute.xlu0 %1197
        %v1199 = vmul.f32 %v1198, %v452
        %v1200 = vadd.f32 %v1196, %v1199
        %v1201 = vmul.f32 %v1160, %v1160
        %v1202 = vmul.f32 %v1161, %v1161
        %v1203 = vmul.f32 %v1162, %v1162
        %v1204 = vmul.f32 %v1163, %v1163
        %v1205 = vadd.f32 %v1201, %v1202
        %v1206 = vadd.f32 %v1205, %v1203
        %v1207 = vadd.f32 %v1206, %v1204
        %v1208 = vrot.slane %v1207, 4
        %v1209 = vadd.f32 %v1207, %v1208
        %v1210 = vrot.slane %v1209, 2
        %v1211 = vadd.f32 %v1209, %v1210
        %v1212 = vrot.slane %v1211, 1
        %v1213 = vadd.f32 %v1211, %v1212
        %1214 = vrot.lane.b32.xlu0 %v1213, 1
        %v1215 = vpop.permute.xlu0 %1214
        %v1216 = vmul.f32 %v1215, %v410
        %v1217 = vadd.f32 %v1213, %v1216
        %1218 = vrot.lane.b32.xlu0 %v1217, 2
        %v1219 = vpop.permute.xlu0 %1218
        %v1220 = vmul.f32 %v1219, %v417
        %v1221 = vadd.f32 %v1217, %v1220
        %1222 = vrot.lane.b32.xlu0 %v1221, 4
        %v1223 = vpop.permute.xlu0 %1222
        %v1224 = vmul.f32 %v1223, %v424
        %v1225 = vadd.f32 %v1221, %v1224
        %1226 = vrot.lane.b32.xlu0 %v1225, 8
        %v1227 = vpop.permute.xlu0 %1226
        %v1228 = vmul.f32 %v1227, %v431
        %v1229 = vadd.f32 %v1225, %v1228
        %1230 = vrot.lane.b32.xlu0 %v1229, 16
        %v1231 = vpop.permute.xlu0 %1230
        %v1232 = vmul.f32 %v1231, %v438
        %v1233 = vadd.f32 %v1229, %v1232
        %1234 = vrot.lane.b32.xlu0 %v1233, 32
        %v1235 = vpop.permute.xlu0 %1234
        %v1236 = vmul.f32 %v1235, %v445
        %v1237 = vadd.f32 %v1233, %v1236
        %1238 = vrot.lane.b32.xlu0 %v1237, 64
        %v1239 = vpop.permute.xlu0 %1238
        %v1240 = vmul.f32 %v1239, %v452
        %v1241 = vadd.f32 %v1237, %v1240
        %v1242 = vmul.f32 %v1200, %v294
        %v1243 = vmul.f32 %v1241, %v294
        %v1244 = vmul.f32 %v1242, %v1242
        %v1245 = vsub.f32 %v1243, %v1244
        %v1246 = vadd.f32 %v1245, 1e-05
        %v1247 = vrsqrt.pop %v1246
        %v1248 = vmul.f32 %v1247, %v1246
        %v1249 = vmul.f32 %v1248, %v1247
        %v1250 = vmul.f32 0.5, %v1249
        %v1251 = vsub.f32 1.5, %v1250
        %v1252 = vmul.f32 %v1247, %v1251
        %vm1253 = vweird.f32 %v1246
        %vm1254 = vweird.f32 %v1247
        %vm1255 = vmor %vm1253, %vm1254
        %v1256 = vsel %vm1255, %v1247, %v1252
        %v1257 = vperm.slane %v1242, 0
        %v1258 = vsub.f32 %v1160, %v1257
        %v1259 = vsub.f32 %v1161, %v1257
        %v1260 = vsub.f32 %v1162, %v1257
        %v1261 = vsub.f32 %v1163, %v1257
        %v1262 = vperm.slane %v1256, 0
        %v1263 = vmul.f32 %v1258, %v1262
        %v1264 = vmul.f32 %v1259, %v1262
        %v1265 = vmul.f32 %v1260, %v1262
        %v1266 = vmul.f32 %v1261, %v1262
        %1267 = vset.pattern.permute.xlu0 10
        %1268 = vperm.xlu0 %1267, %v295
        %v1269 = vpop.permute.xlu0 %1268
        %1271 = vset.pattern.permute.xlu0 10
        %1272 = vperm.xlu0 %1271, %v296
        %v1273 = vpop.permute.xlu0 %1272
        %1275 = vset.pattern.permute.xlu0 10
        %1276 = vperm.xlu0 %1275, %v297
        %v1277 = vpop.permute.xlu0 %1276
        %1279 = vset.pattern.permute.xlu0 10
        %1280 = vperm.xlu0 %1279, %v298
        %v1281 = vpop.permute.xlu0 %1280
        %v1283 = vmul.f32 %v1263, %v1269
        %v1284 = vmul.f32 %v1264, %v1273
        %v1285 = vmul.f32 %v1265, %v1277
        %v1286 = vmul.f32 %v1266, %v1281
        %1287 = vset.pattern.permute.xlu0 11
        %1288 = vperm.xlu0 %1287, %v295
        %v1289 = vpop.permute.xlu0 %1288
        %1291 = vset.pattern.permute.xlu0 11
        %1292 = vperm.xlu0 %1291, %v296
        %v1293 = vpop.permute.xlu0 %1292
        %1295 = vset.pattern.permute.xlu0 11
        %1296 = vperm.xlu0 %1295, %v297
        %v1297 = vpop.permute.xlu0 %1296
        %1299 = vset.pattern.permute.xlu0 11
        %1300 = vperm.xlu0 %1299, %v298
        %v1301 = vpop.permute.xlu0 %1300
        %v1303 = vadd.f32 %v1283, %v1289
        %v1304 = vadd.f32 %v1284, %v1293
        %v1305 = vadd.f32 %v1285, %v1297
        %v1306 = vadd.f32 %v1286, %v1301
        %v1307 = vld [vmem:[%s3] sm:$0xff]
        %v1308 = vld [vmem:[%s3 + $0x8] sm:$0xff]
        %v1309 = vld [vmem:[%s3 + $0x10] sm:$0xff]
        %v1310 = vld [vmem:[%s3 + $0x18] sm:$0xff]
        %v1311 = vld [vmem:[%s3 + $0x20] sm:$0xff]
        %v1312 = vld [vmem:[%s3 + $0x28] sm:$0xff]
        %v1313 = vld [vmem:[%s3 + $0x30] sm:$0xff]
        %v1314 = vld [vmem:[%s3 + $0x38] sm:$0xff]
        %v1315 = vld [vmem:[%s5] sm:$0xff]
        %v1316 = vld [vmem:[%s5 + $0x8] sm:$0xff]
        %v1317 = vld [vmem:[%s5 + $0x10] sm:$0xff]
        %v1318 = vld [vmem:[%s5 + $0x18] sm:$0xff]
        %v1319 = vld [vmem:[%s5 + $0x20] sm:$0xff]
        %v1320 = vld [vmem:[%s5 + $0x28] sm:$0xff]
        %v1321 = vld [vmem:[%s5 + $0x30] sm:$0xff]
        %v1322 = vld [vmem:[%s5 + $0x38] sm:$0xff]
        %1324 = vset.pattern.permute.xlu0 0
        %1325 = vperm.xlu0 %1324, %v1315
        %v1326 = vpop.permute.xlu0 %1325
        %1329 = vset.pattern.permute.xlu0 0
        %1330 = vperm.xlu0 %1329, %v1316
        %v1331 = vpop.permute.xlu0 %1330
        %1334 = vset.pattern.permute.xlu0 0
        %1335 = vperm.xlu0 %1334, %v1317
        %v1336 = vpop.permute.xlu0 %1335
        %1339 = vset.pattern.permute.xlu0 0
        %1340 = vperm.xlu0 %1339, %v1318
        %v1341 = vpop.permute.xlu0 %1340
        %1344 = vset.pattern.permute.xlu0 0
        %1345 = vperm.xlu0 %1344, %v1319
        %v1346 = vpop.permute.xlu0 %1345
        %1349 = vset.pattern.permute.xlu0 0
        %1350 = vperm.xlu0 %1349, %v1320
        %v1351 = vpop.permute.xlu0 %1350
        %1354 = vset.pattern.permute.xlu0 0
        %1355 = vperm.xlu0 %1354, %v1321
        %v1356 = vpop.permute.xlu0 %1355
        %1359 = vset.pattern.permute.xlu0 0
        %1360 = vperm.xlu0 %1359, %v1322
        %v1361 = vpop.permute.xlu0 %1360
        %v1364 = vsel %vm566, %v1307, 0
        %v1367 = vsel %vm566, %v1308, 0
        %v1370 = vsel %vm566, %v1309, 0
        %v1373 = vsel %vm566, %v1310, 0
        %v1376 = vsel %vm566, %v1311, 0
        %v1379 = vsel %vm566, %v1312, 0
        %v1382 = vsel %vm566, %v1313, 0
        %v1385 = vsel %vm566, %v1314, 0
        %1387 = vmatpush.msra.mxu0 0.0
        %1388 = vmatpush.msra.mxu0 0.0
        %1389 = vmatpush.msra.mxu0 0.0
        %1390 = vmatpush.msra.mxu0 0.0
        %1391 = vmatpush.msra.mxu0 0.0
        %1392 = vmatpush.msra.mxu0 0.0
        %1393 = vmatpush.msra.mxu0 0.0
        %1394 = vmatpush.msra.mxu0 0.0
        %1395 = vmatpush.msra.mxu0 0.0
        %1396 = vmatpush.msra.mxu0 0.0
        %1397 = vmatpush.msra.mxu0 0.0
        %1398 = vmatpush.msra.mxu0 0.0
        %1399 = vmatpush.msra.mxu0 %v1306
        %1400 = vmatpush.msra.mxu0 %v1305
        %1401 = vmatpush.msra.mxu0 %v1304
        %1402 = vmatpush.msra.mxu0 %v1303
        %1403 = vmatmul.f32.gmra.mxu0 %v1364
        %v1404 = vpop.f32.mrf.mxu0
        %v1405 = vadd.f32 %v1326, %v1404
        %1406 = vmatmul.f32.gmra.mxu0 %v1367
        %v1407 = vpop.f32.mrf.mxu0
        %v1408 = vadd.f32 %v1331, %v1407
        %1409 = vmatmul.f32.gmra.mxu0 %v1370
        %v1410 = vpop.f32.mrf.mxu0
        %v1411 = vadd.f32 %v1336, %v1410
        %1412 = vmatmul.f32.gmra.mxu0 %v1373
        %v1413 = vpop.f32.mrf.mxu0
        %v1414 = vadd.f32 %v1341, %v1413
        %1415 = vmatmul.f32.gmra.mxu0 %v1376
        %v1416 = vpop.f32.mrf.mxu0
        %v1417 = vadd.f32 %v1346, %v1416
        %1418 = vmatmul.f32.gmra.mxu0 %v1379
        %v1419 = vpop.f32.mrf.mxu0
        %v1420 = vadd.f32 %v1351, %v1419
        %1421 = vmatmul.f32.gmra.mxu0 %v1382
        %v1422 = vpop.f32.mrf.mxu0
        %v1423 = vadd.f32 %v1356, %v1422
        %1424 = vmatmul.f32.gmra.mxu0 %v1385
        %v1425 = vpop.f32.mrf.mxu0
        %v1426 = vadd.f32 %v1361, %v1425
        %1427 = vdwg.mxu0
        %v1428 = vadd.f32 %v1405, %v267
        %v1429 = vadd.f32 %v1408, %v268
        %v1430 = vadd.f32 %v1411, %v269
        %v1431 = vadd.f32 %v1414, %v270
        %v1432 = vadd.f32 %v1417, %v271
        %v1433 = vadd.f32 %v1420, %v272
        %v1434 = vadd.f32 %v1423, %v273
        %v1435 = vadd.f32 %v1426, %v274
        %1436 = vst [vmem:[%s261] sm:$0xff] %v1428
        %1437 = vst [vmem:[%s261 + $0x8] sm:$0xff] %v1429
        %1438 = vst [vmem:[%s261 + $0x10] sm:$0xff] %v1430
        %1439 = vst [vmem:[%s261 + $0x18] sm:$0xff] %v1431
        %1440 = vst [vmem:[%s261 + $0x20] sm:$0xff] %v1432
        %1441 = vst [vmem:[%s261 + $0x28] sm:$0xff] %v1433
        %1442 = vst [vmem:[%s261 + $0x30] sm:$0xff] %v1434
        %1443 = vst [vmem:[%s261 + $0x38] sm:$0xff] %v1435
        %s1444 = sand.u32 %s160, 1
        %s1445 = scalar_lea.sflag [#allocation4], %s1444
        %s1446 = sand.u32 %s160, 1
        %s1447 = smul.addr %s1446, 64
        %s1448 = scalar_lea.vmem [#allocation5], %s1447
        // Predicated region
        $region49: #{tpu_custom_call.1} parent=43 // pred_check
          %p1449 = pneg %p170
        $region50: #{tpu_custom_call.1} parent=43 // pred_check_branch
          %1451 = sbr.rel (%p1449) target = $region52
        $region51: #{tpu_custom_call.1} parent=43 // pred_region
          %1453 = vsyncadd %s1445, 0
          %s1454 = smul.addr %s21, 8
          %s1455 = smul.addr %s1454, 8
          %s1456 = scalar_lea.hbm %s6, %s1455
          %s1457 = sshll.u32 %s1448, 4
          %s1458 = int_to_ptr.vmem [resolvable:$true] %s1457
          %s1459 = sshll.u32 %s1456, 4
          %s1460 = int_to_ptr.hbm [resolvable:$true] %s1459
          %1465 = dma.vmem_to_hbm [thread:$0]  %s1458, 1024, %s1460, %s1445, 128, 128, 8
        $region52: #{tpu_custom_call.1} parent=43 // pred_fallthru
          _
      $region44: #{tpu_custom_call.1} parent=5 // pred_fallthru
        _
      %p1466 = scmp.le.s32.totalorder 2, %s16
      // Predicated region
      $region53: #{tpu_custom_call.1} parent=5 // pred_check
        %p1467 = pneg %p1466
      $region54: #{tpu_custom_call.1} parent=5 // pred_check_branch
        %1469 = sbr.rel (%p1467) target = $region56
      $region55: #{tpu_custom_call.1} parent=5 // pred_region
        %s1470 = ssub.s32 %s16, 2
        // Predicated region
        $region57: #{tpu_custom_call.1} parent=55 // pred_check
          %p1471 = pneg %p176
        $region58: #{tpu_custom_call.1} parent=55 // pred_check_branch
          %1473 = sbr.rel (%p1471) target = $region60
        $region59: #{tpu_custom_call.1} parent=55 // pred_region
          %s1474 = sand.u32 %s161, 1
          %s1475 = scalar_lea.sflag [#allocation4], %s1474
          %s1476 = sand.u32 %s161, 1
          %s1477 = smul.addr %s1476, 64
          %s1478 = scalar_lea.vmem [#allocation5], %s1477
          %1480 = dma.done %s1475, 1024
        $region60: #{tpu_custom_call.1} parent=55 // pred_fallthru
          _
      $region56: #{tpu_custom_call.1} parent=5 // pred_fallthru
        _
    $region6: #{tpu_custom_call.1} parent=1 // loop_footer
      %s20 = sadd.s32 1, %s16
    $region7: #{tpu_custom_call.1} parent=1 // loop_footer_branch
      %15 = sbr.rel target = $region3
    $region8: #{tpu_custom_call.1} parent=1 // loop_exit
      _
    %1481 = vsyncpa [#allocation3], 1
    %s1482 = scalar_lea.sflag [#allocation3], 1
    %1483 = vsyncpa %s1482, 1
    %1484 = vsyncpa [#allocation4], 1
    %s1485 = scalar_lea.sflag [#allocation4], 1
    %1486 = vsyncpa %s1485, 1

</llo_original>
